<compile_context>
chip_gen: v5e
topology: v5e:2x2
jax: 0.10.0
libtpu: 0.0.40
codegen_flags: <defaults>
</compile_context>

<pallas_src>
import functools
import math

import jax
import jax.numpy as jnp
from jax.experimental import pallas as pl
from jax.experimental.pallas import tpu as pltpu


# ----------------------------------------------------------------------------
# Pallas kernel: all transformer layers, TB batch samples per grid step.
# Grid = (B // TB, depth); depth iterates innermost, residual carried in o_ref.
# ----------------------------------------------------------------------------
def _transformer_kernel(x_ref, ln1_g_ref, ln1_b_ref, wq_ref, wk_ref, wv_ref,
                        wout_ref, ln2_g_ref, ln2_b_ref, wa_ref, ba_ref,
                        wg_ref, bg_ref, wff2_ref, bff2_ref, o_ref,
                        *, tb, n, d, heads, dim_head, eps=1e-5):
    layer = pl.program_id(1)
    m = tb * n
    inner = heads * dim_head
    f32 = jnp.float32
    bf16 = jnp.bfloat16

    # The residual stream lives in o_ref (same output block index across the
    # depth axis => block stays resident in VMEM, written back to HBM only when
    # the batch block index changes).  Initialize it from HBM x at layer 0.
    # NOTE: this relies on the depth axis being the innermost, "arbitrary" grid
    # axis -- do not reorder the grid.
    @pl.when(layer == 0)
    def _():
        o_ref[...] = x_ref[...]

    x = o_ref[...].reshape(m, d).astype(f32)          # (M, D) f32 residual stream

    def layernorm(v, g, b):
        mu = jnp.mean(v, axis=-1, keepdims=True)
        var = jnp.mean((v - mu) ** 2, axis=-1, keepdims=True)
        return (v - mu) * jax.lax.rsqrt(var + eps) * g + b

    # ---- Attention block (pre-LN).  Softmax scale pre-folded into W_q. ----
    xn = layernorm(x, ln1_g_ref[...], ln1_b_ref[...]).astype(bf16)         # (M, D)
    q = jnp.dot(xn, wq_ref[...], preferred_element_type=f32)               # (M, inner)
    k = jnp.dot(xn, wk_ref[...], preferred_element_type=f32)
    v = jnp.dot(xn, wv_ref[...], preferred_element_type=f32)

    # token-major (M, H*dh) -> head-major batched (TB*H, N, dh); one relayout
    # per tensor instead of per-head lane slices.
    def to_heads(t):
        t = t.reshape(tb, n, heads, dim_head).transpose(0, 2, 1, 3)
        return t.reshape(tb * heads, n, dim_head).astype(bf16)

    qh, kh, vh = to_heads(q), to_heads(k), to_heads(v)

    # Batched over (TB*H); contraction on dh (no explicit transpose of K).
    sim = jnp.einsum("bid,bjd->bij", qh, kh,
                     preferred_element_type=f32)                           # (TB*H, N, N)
    sim = sim - jnp.max(sim, axis=-1, keepdims=True)
    p = jnp.exp(sim)
    attn = p * pl.reciprocal(jnp.sum(p, axis=-1, keepdims=True), approx=True)
    oh = jnp.einsum("bij,bjd->bid", attn.astype(bf16), vh,
                    preferred_element_type=f32)                            # (TB*H, N, dh)

    # head-major -> token-major (M, inner), then ONE fused output projection.
    o_tok = oh.reshape(tb, heads, n, dim_head).transpose(0, 2, 1, 3)
    o_tok = o_tok.reshape(m, inner).astype(bf16)
    x = x + jnp.dot(o_tok, wout_ref[...], preferred_element_type=f32)      # attn_out + x

    # ---- FeedForward block (pre-LN, GEGLU with exact erf-GELU).  W_ff1 is
    # pre-split into the value (Wa) and gate (Wg) halves -> no 8D slab/slices.
    xn2 = layernorm(x, ln2_g_ref[...], ln2_b_ref[...]).astype(bf16)
    a = jnp.dot(xn2, wa_ref[...], preferred_element_type=f32) + ba_ref[...]   # (M, 4D)
    g = jnp.dot(xn2, wg_ref[...], preferred_element_type=f32) + bg_ref[...]   # (M, 4D)
    gelu_g = 0.5 * g * (1.0 + jax.lax.erf(g * 0.7071067811865476))
    hidden = (a * gelu_g).astype(bf16)                                        # (M, 4D)
    ff = jnp.dot(hidden, wff2_ref[...], preferred_element_type=f32) + bff2_ref[...]
    out = ff + x                                                              # residual

    o_ref[...] = out.reshape(tb, n, d).astype(o_ref.dtype)   # carry to next layer in VMEM


# ----------------------------------------------------------------------------
# Wrapper: stacks per-layer params, splits W_qkv / W_ff1, folds the QK scale,
# casts weights to bf16.
# ----------------------------------------------------------------------------
def prepare_params(layer_params, *, heads, dim_head):
    inner = heads * dim_head
    scale = dim_head ** (-0.5)
    stack = lambda name: jnp.stack([p[name] for p in layer_params], axis=0)

    wqkv = stack("wqkv")                                  # (depth, D, 3*inner) f32
    wq = wqkv[:, :, 0 * inner:1 * inner] * scale          # fold softmax scale into Q
    wk = wqkv[:, :, 1 * inner:2 * inner]
    wv = wqkv[:, :, 2 * inner:3 * inner]

    wff1 = stack("wff1")                                  # (depth, D, 8D) f32
    bff1 = stack("bff1")                                  # (depth, 1, 8D) f32
    dim4 = wff1.shape[-1] // 2
    wa, wg = wff1[:, :, :dim4], wff1[:, :, dim4:]
    ba, bg = bff1[:, :, :dim4], bff1[:, :, dim4:]

    bf16 = jnp.bfloat16
    return {
        "ln1_g": stack("ln1_g"), "ln1_b": stack("ln1_b"),  # (depth, 1, D) f32
        "wq": wq.astype(bf16), "wk": wk.astype(bf16), "wv": wv.astype(bf16),
        "wout": stack("wout").astype(bf16),
        "ln2_g": stack("ln2_g"), "ln2_b": stack("ln2_b"),
        "wa": wa.astype(bf16), "ba": ba,                   # biases kept f32
        "wg": wg.astype(bf16), "bg": bg,
        "wff2": stack("wff2").astype(bf16),
        "bff2": stack("bff2"),
    }


def _vmem_capacity_bytes():
    try:
        return int(pltpu.get_tpu_info().vmem_capacity_bytes)
    except Exception:
        return 64 * 1024 * 1024   # conservative: v7x per-TensorCore VMEM


def _per_layer_weight_bytes(d, inner):
    wb = 2 * (3 * d * inner + inner * d + 8 * d * d + 4 * d * d)   # bf16 weights
    wb += 4 * (4 * d + 8 * d + d)                                  # f32 LN / biases
    return wb


def _choose_block_b(B, N, D, inner, heads, budget_bytes):
    """Largest batch-block divisor whose estimated VMEM working set fits."""
    fixed = 2 * _per_layer_weight_bytes(D, inner)          # double-buffered weight set

    def est(tb):
        m = tb * N
        act = 4 * m * (2 * D + 4 * inner + 12 * D)         # f32 intermediates (rough)
        act += 2 * 4 * tb * heads * N * N                  # softmax slabs
        act += 3 * 4 * tb * N * D                          # x (double-buffered) + out slab
        return act

    best = 1
    for tb in range(1, B + 1):
        if B % tb == 0 and fixed + est(tb) <= budget_bytes:
            best = tb
    return best


def transformer_forward(x, stacked, *, heads, dim_head, block_b=None):
    """All layers in one pallas_call. x: (B, N, D) f32. stacked: prepare_params output."""
    B, N, D = x.shape
    depth = stacked["wq"].shape[0]
    inner = heads * dim_head
    dim4 = stacked["wa"].shape[-1]

    # Generation-aware VMEM budget (review: 64 MiB on v7x, 128 MiB on v5e/v6e).
    vmem_cap = _vmem_capacity_bytes()
    vmem_limit = int(vmem_cap * 0.85)
    if block_b is None:
        block_b = _choose_block_b(B, N, D, inner, heads, int(vmem_limit * 0.7))
    tb = block_b
    assert B % tb == 0, "block_b must divide batch"

    kernel = functools.partial(_transformer_kernel, tb=tb, n=N, d=D,
                               heads=heads, dim_head=dim_head)

    # Stacked weights: depth dim squeezed out, pipelined over the depth grid axis.
    def wspec(*shape):
        return pl.BlockSpec((None,) + shape, lambda b, l: (l,) + (0,) * len(shape))

    # Advisory cost estimate for XLA scheduling around this long fused call.
    flops = 2 * depth * B * N * (D * 3 * inner + inner * D + 8 * D * D + 4 * D * D)
    flops += 2 * depth * B * heads * N * N * dim_head * 2
    transcendentals = depth * B * (heads * N * N + N * 4 * D + 2 * N)
    bytes_accessed = (2 * B * N * D * 4
                      + (B // tb) * depth * _per_layer_weight_bytes(D, inner))
    cost = pl.CostEstimate(flops=flops, transcendentals=transcendentals,
                           bytes_accessed=bytes_accessed)

    return pl.pallas_call(
        kernel,
        out_shape=jax.ShapeDtypeStruct((B, N, D), x.dtype),
        grid=(B // tb, depth),
        in_specs=[
            pl.BlockSpec((tb, N, D), lambda b, l: (b, 0, 0)),   # x slab (read at l==0)
            wspec(1, D),            # ln1 gamma
            wspec(1, D),            # ln1 beta
            wspec(D, inner),        # W_q (scale folded, bf16)
            wspec(D, inner),        # W_k (bf16)
            wspec(D, inner),        # W_v (bf16)
            wspec(inner, D),        # W_out (bf16)
            wspec(1, D),            # ln2 gamma
            wspec(1, D),            # ln2 beta
            wspec(D, dim4),         # W_ff1 value half (bf16)
            wspec(1, dim4),         # b_ff1 value half (f32)
            wspec(D, dim4),         # W_ff1 gate half (bf16)
            wspec(1, dim4),         # b_ff1 gate half (f32)
            wspec(dim4, D),         # W_ff2 (bf16)
            wspec(1, D),            # b_ff2 (f32)
        ],
        out_specs=pl.BlockSpec((tb, N, D), lambda b, l: (b, 0, 0)),
        compiler_params=pltpu.CompilerParams(
            dimension_semantics=("parallel", "arbitrary"),
            vmem_limit_bytes=vmem_limit),
        cost_estimate=cost,
    )(x, stacked["ln1_g"], stacked["ln1_b"], stacked["wq"], stacked["wk"],
      stacked["wv"], stacked["wout"], stacked["ln2_g"], stacked["ln2_b"],
      stacked["wa"], stacked["ba"], stacked["wg"], stacked["bg"],
      stacked["wff2"], stacked["bff2"])
    # TODO(synk): return_attn=True path (stacking post-softmax attention maps) is
    # not returned from the kernel; only the default return_attn=False output is produced.


# ----------------------------------------------------------------------------
# Pure-JAX f32 reference (mirrors the PyTorch forward exactly) for validation.
# ----------------------------------------------------------------------------
def _ref_layer(x, p, heads, dim_head, eps=1e-5):
    inner = heads * dim_head
    scale = dim_head ** (-0.5)

    def ln(v, g, b):
        mu = jnp.mean(v, axis=-1, keepdims=True)
        var = jnp.mean((v - mu) ** 2, axis=-1, keepdims=True)
        return (v - mu) / jnp.sqrt(var + eps) * g + b

    xn = ln(x, p["ln1_g"], p["ln1_b"])
    qkv = xn @ p["wqkv"]
    q, k, v = jnp.split(qkv, 3, axis=-1)
    B, N, _ = x.shape
    reh = lambda t: t.reshape(B, N, heads, dim_head).transpose(0, 2, 1, 3)
    q, k, v = map(reh, (q, k, v))
    q = q * scale
    sim = jnp.einsum("bhid,bhjd->bhij", q, k)
    attn = jax.nn.softmax(sim, axis=-1)
    out = jnp.einsum("bhij,bhjd->bhid", attn, v)
    out = out.transpose(0, 2, 1, 3).reshape(B, N, inner)
    x = out @ p["wout"] + x

    xn2 = ln(x, p["ln2_g"], p["ln2_b"])
    h1 = xn2 @ p["wff1"] + p["bff1"]
    a, g = jnp.split(h1, 2, axis=-1)
    hidden = a * (0.5 * g * (1.0 + jax.lax.erf(g / math.sqrt(2.0))))
    return hidden @ p["wff2"] + p["bff2"] + x


def _ref_forward(x, layer_params, heads, dim_head):
    for p in layer_params:
        x = _ref_layer(x, p, heads, dim_head)
    return x


# ----------------------------------------------------------------------------
# Deterministic parameter init (PyTorch-default-ish: LN ones/zeros, small weights).
# ----------------------------------------------------------------------------
def init_layer_params(key, dim, heads, dim_head):
    inner = heads * dim_head
    ks = jax.random.split(key, 6)
    f32 = jnp.float32
    return {
        "ln1_g": jnp.ones((1, dim), f32),
        "ln1_b": jnp.zeros((1, dim), f32),
        "wqkv":  (jax.random.normal(ks[0], (dim, 3 * inner), f32) * 0.05),
        "wout":  (jax.random.normal(ks[1], (inner, dim), f32) * 0.05),
        "ln2_g": jnp.ones((1, dim), f32),
        "ln2_b": jnp.zeros((1, dim), f32),
        "wff1":  (jax.random.normal(ks[2], (dim, 8 * dim), f32) * 0.05),
        "bff1":  (jax.random.normal(ks[3], (1, 8 * dim), f32) * 0.02),
        "wff2":  (jax.random.normal(ks[4], (4 * dim, dim), f32) * 0.05),
        "bff2":  (jax.random.normal(ks[5], (1, dim), f32) * 0.02),
    }


if __name__ == "__main__":
    # Small shapes consistent with the module: dim=32, depth=2, heads=2, dim_head=16.
    B, N, DIM = 4, 8, 32
    DEPTH, HEADS, DIM_HEAD = 2, 2, 16

    root = jax.random.PRNGKey(0)
    kx, kp = jax.random.split(root)
    x = jax.random.normal(kx, (B, N, DIM), jnp.float32)

    layer_keys = jax.random.split(kp, DEPTH)
    params = [init_layer_params(k, DIM, HEADS, DIM_HEAD) for k in layer_keys]
    stacked = prepare_params(params, heads=HEADS, dim_head=DIM_HEAD)

    # block_b=2 exercises the multi-block batch grid and the layer-0 init path.
    out = transformer_forward(x, stacked, heads=HEADS, dim_head=DIM_HEAD, block_b=2)
    out = jax.block_until_ready(out)

    ref = jax.block_until_ready(_ref_forward(x, params, HEADS, DIM_HEAD))
    assert out.shape == (B, N, DIM)
    # bf16 MXU inputs + approx reciprocal => loosened tolerance vs. f32 reference.
    assert jnp.allclose(out, ref, atol=3e-2, rtol=3e-2), "mismatch vs. JAX reference"

    print("KERNEL_OK")
</pallas_src>

<mosaic_0001>
module attributes {stable_mosaic.version = 11 : i64} {
  func.func @_transformer_kernel(%arg0: i32, %arg1: i32, %arg2: memref<2x8x32xf32, #tpu.memory_space<vmem>>, %arg3: memref<1x1x32xf32, #tpu.memory_space<vmem>>, %arg4: memref<1x1x32xf32, #tpu.memory_space<vmem>>, %arg5: memref<1x32x32xbf16, #tpu.memory_space<vmem>>, %arg6: memref<1x32x32xbf16, #tpu.memory_space<vmem>>, %arg7: memref<1x32x32xbf16, #tpu.memory_space<vmem>>, %arg8: memref<1x32x32xbf16, #tpu.memory_space<vmem>>, %arg9: memref<1x1x32xf32, #tpu.memory_space<vmem>>, %arg10: memref<1x1x32xf32, #tpu.memory_space<vmem>>, %arg11: memref<1x32x128xbf16, #tpu.memory_space<vmem>>, %arg12: memref<1x1x128xf32, #tpu.memory_space<vmem>>, %arg13: memref<1x32x128xbf16, #tpu.memory_space<vmem>>, %arg14: memref<1x1x128xf32, #tpu.memory_space<vmem>>, %arg15: memref<1x128x32xbf16, #tpu.memory_space<vmem>>, %arg16: memref<1x1x32xf32, #tpu.memory_space<vmem>>, %arg17: memref<2x8x32xf32, #tpu.memory_space<vmem>>) attributes {dimension_semantics = [#tpu.dimension_semantics<parallel>, #tpu.dimension_semantics<arbitrary>], iteration_bounds = array<i64: 2, 2>, scalar_prefetch = 0 : i64, scratch_operands = 0 : i64, tpu.core_type = #tpu.core_type<tc>, window_params = [{transform_indices = @transform_0, window_bounds = array<i64: 2, 8, 32>}, {transform_indices = @transform_1, window_bounds = array<i64: 1, 1, 32>}, {transform_indices = @transform_2, window_bounds = array<i64: 1, 1, 32>}, {transform_indices = @transform_3, window_bounds = array<i64: 1, 32, 32>}, {transform_indices = @transform_4, window_bounds = array<i64: 1, 32, 32>}, {transform_indices = @transform_5, window_bounds = array<i64: 1, 32, 32>}, {transform_indices = @transform_6, window_bounds = array<i64: 1, 32, 32>}, {transform_indices = @transform_7, window_bounds = array<i64: 1, 1, 32>}, {transform_indices = @transform_8, window_bounds = array<i64: 1, 1, 32>}, {transform_indices = @transform_9, window_bounds = array<i64: 1, 32, 128>}, {transform_indices = @transform_10, window_bounds = array<i64: 1, 1, 128>}, {transform_indices = @transform_11, window_bounds = array<i64: 1, 32, 128>}, {transform_indices = @transform_12, window_bounds = array<i64: 1, 1, 128>}, {transform_indices = @transform_13, window_bounds = array<i64: 1, 128, 32>}, {transform_indices = @transform_14, window_bounds = array<i64: 1, 1, 32>}, {transform_indices = @transform_15, window_bounds = array<i64: 2, 8, 32>}]} {
    %c0_i32 = arith.constant 0 : i32
    %0 = arith.cmpi eq, %arg1, %c0_i32 : i32
    %1 = arith.extui %0 : i1 to i32
    %c0_i32_0 = arith.constant 0 : i32
    %2 = arith.cmpi ne, %1, %c0_i32_0 : i32
    scf.if %2 {
      %c0_71 = arith.constant 0 : index
      %c0_72 = arith.constant 0 : index
      %c0_73 = arith.constant 0 : index
      %135 = vector.load %arg2[%c0_71, %c0_72, %c0_73] : memref<2x8x32xf32, #tpu.memory_space<vmem>>, vector<2x8x32xf32>
      %c0_74 = arith.constant 0 : index
      %c0_75 = arith.constant 0 : index
      %c0_76 = arith.constant 0 : index
      %136 = vector.load %arg17[%c0_74, %c0_75, %c0_76] : memref<2x8x32xf32, #tpu.memory_space<vmem>>, vector<2x8x32xf32>
      tpu.vector_store %arg17[%c0_74, %c0_75, %c0_76], %135 {strides = array<i32>} : memref<2x8x32xf32, #tpu.memory_space<vmem>>, vector<2x8x32xf32>,
    } else {
    }
    %c0 = arith.constant 0 : index
    %c0_1 = arith.constant 0 : index
    %c0_2 = arith.constant 0 : index
    %3 = vector.load %arg17[%c0, %c0_1, %c0_2] : memref<2x8x32xf32, #tpu.memory_space<vmem>>, vector<2x8x32xf32>
    %4 = vector.shape_cast %3 : vector<2x8x32xf32> to vector<16x32xf32>
    %c0_3 = arith.constant 0 : index
    %c0_4 = arith.constant 0 : index
    %c0_5 = arith.constant 0 : index
    %5 = vector.load %arg3[%c0_3, %c0_4, %c0_5] : memref<1x1x32xf32, #tpu.memory_space<vmem>>, vector<1x1x32xf32>
    %6 = vector.shape_cast %5 : vector<1x1x32xf32> to vector<1x32xf32>
    %c0_6 = arith.constant 0 : index
    %c0_7 = arith.constant 0 : index
    %c0_8 = arith.constant 0 : index
    %7 = vector.load %arg4[%c0_6, %c0_7, %c0_8] : memref<1x1x32xf32, #tpu.memory_space<vmem>>, vector<1x1x32xf32>
    %8 = vector.shape_cast %7 : vector<1x1x32xf32> to vector<1x32xf32>
    %cst = arith.constant dense<0.000000e+00> : vector<16xf32>
    %9 = vector.multi_reduction <add>, %4, %cst [1] : vector<16x32xf32> to vector<16xf32>
    %10 = vector.shape_cast %9 : vector<16xf32> to vector<16x1xf32>
    %cst_9 = arith.constant 3.200000e+01 : f32
    %11 = vector.broadcast %cst_9 : f32 to vector<16x1xf32>
    %12 = arith.divf %10, %11 : vector<16x1xf32>
    %13 = vector.broadcast %12 : vector<16x1xf32> to vector<16x32xf32>
    %14 = arith.subf %4, %13 : vector<16x32xf32>
    %15 = arith.mulf %14, %14 : vector<16x32xf32>
    %cst_10 = arith.constant dense<0.000000e+00> : vector<16xf32>
    %16 = vector.multi_reduction <add>, %15, %cst_10 [1] : vector<16x32xf32> to vector<16xf32>
    %17 = vector.shape_cast %16 : vector<16xf32> to vector<16x1xf32>
    %cst_11 = arith.constant 3.200000e+01 : f32
    %18 = vector.broadcast %cst_11 : f32 to vector<16x1xf32>
    %19 = arith.divf %17, %18 : vector<16x1xf32>
    %20 = vector.broadcast %12 : vector<16x1xf32> to vector<16x32xf32>
    %21 = arith.subf %4, %20 : vector<16x32xf32>
    %cst_12 = arith.constant 9.99999974E-6 : f32
    %22 = vector.broadcast %cst_12 : f32 to vector<16x1xf32>
    %23 = arith.addf %19, %22 : vector<16x1xf32>
    %24 = math.rsqrt %23 : vector<16x1xf32>
    %25 = vector.broadcast %24 : vector<16x1xf32> to vector<16x32xf32>
    %26 = arith.mulf %21, %25 : vector<16x32xf32>
    %27 = vector.broadcast %6 : vector<1x32xf32> to vector<16x32xf32>
    %28 = arith.mulf %26, %27 : vector<16x32xf32>
    %29 = vector.broadcast %8 : vector<1x32xf32> to vector<16x32xf32>
    %30 = arith.addf %28, %29 : vector<16x32xf32>
    %31 = arith.truncf %30 : vector<16x32xf32> to vector<16x32xbf16>
    %c0_13 = arith.constant 0 : index
    %c0_14 = arith.constant 0 : index
    %c0_15 = arith.constant 0 : index
    %32 = vector.load %arg5[%c0_13, %c0_14, %c0_15] : memref<1x32x32xbf16, #tpu.memory_space<vmem>>, vector<1x32x32xbf16>
    %33 = vector.shape_cast %32 : vector<1x32x32xbf16> to vector<32x32xbf16>
    %cst_16 = arith.constant dense<0.000000e+00> : vector<16x32xf32>
    %34 = tpu.matmul %31, %33, %cst_16 {dimension_numbers = #tpu.dot_dimension_numbers<[1], [0], [0], [1], [0, 0, 1, 1], [], []>} : vector<16x32xbf16>, vector<32x32xbf16>, vector<16x32xf32> -> vector<16x32xf32>
    %c0_17 = arith.constant 0 : index
    %c0_18 = arith.constant 0 : index
    %c0_19 = arith.constant 0 : index
    %35 = vector.load %arg6[%c0_17, %c0_18, %c0_19] : memref<1x32x32xbf16, #tpu.memory_space<vmem>>, vector<1x32x32xbf16>
    %36 = vector.shape_cast %35 : vector<1x32x32xbf16> to vector<32x32xbf16>
    %cst_20 = arith.constant dense<0.000000e+00> : vector<16x32xf32>
    %37 = tpu.matmul %31, %36, %cst_20 {dimension_numbers = #tpu.dot_dimension_numbers<[1], [0], [0], [1], [0, 0, 1, 1], [], []>} : vector<16x32xbf16>, vector<32x32xbf16>, vector<16x32xf32> -> vector<16x32xf32>
    %c0_21 = arith.constant 0 : index
    %c0_22 = arith.constant 0 : index
    %c0_23 = arith.constant 0 : index
    %38 = vector.load %arg7[%c0_21, %c0_22, %c0_23] : memref<1x32x32xbf16, #tpu.memory_space<vmem>>, vector<1x32x32xbf16>
    %39 = vector.shape_cast %38 : vector<1x32x32xbf16> to vector<32x32xbf16>
    %cst_24 = arith.constant dense<0.000000e+00> : vector<16x32xf32>
    %40 = tpu.matmul %31, %39, %cst_24 {dimension_numbers = #tpu.dot_dimension_numbers<[1], [0], [0], [1], [0, 0, 1, 1], [], []>} : vector<16x32xbf16>, vector<32x32xbf16>, vector<16x32xf32> -> vector<16x32xf32>
    %41 = vector.shape_cast %34 : vector<16x32xf32> to vector<2x8x2x16xf32>
    %42 = tpu.transpose %41, [0, 2, 1, 3] : vector<2x8x2x16xf32> -> vector<2x2x8x16xf32>
    %43 = vector.shape_cast %42 : vector<2x2x8x16xf32> to vector<4x8x16xf32>
    %44 = arith.truncf %43 : vector<4x8x16xf32> to vector<4x8x16xbf16>
    %45 = vector.shape_cast %37 : vector<16x32xf32> to vector<2x8x2x16xf32>
    %46 = tpu.transpose %45, [0, 2, 1, 3] : vector<2x8x2x16xf32> -> vector<2x2x8x16xf32>
    %47 = vector.shape_cast %46 : vector<2x2x8x16xf32> to vector<4x8x16xf32>
    %48 = arith.truncf %47 : vector<4x8x16xf32> to vector<4x8x16xbf16>
    %49 = vector.shape_cast %40 : vector<16x32xf32> to vector<2x8x2x16xf32>
    %50 = tpu.transpose %49, [0, 2, 1, 3] : vector<2x8x2x16xf32> -> vector<2x2x8x16xf32>
    %51 = vector.shape_cast %50 : vector<2x2x8x16xf32> to vector<4x8x16xf32>
    %52 = arith.truncf %51 : vector<4x8x16xf32> to vector<4x8x16xbf16>
    "tpu.trace_start"() <{level = 10 : i32, message = "bid,bjd->bij"}> : () -> ()
    %cst_25 = arith.constant dense<0.000000e+00> : vector<4x8x8xf32>
    %53 = tpu.matmul %44, %48, %cst_25 {dimension_numbers = #tpu.dot_dimension_numbers<[2], [2], [1], [1], [0, 0, 0, 1, 1, 1], [0], [0]>} : vector<4x8x16xbf16>, vector<4x8x16xbf16>, vector<4x8x8xf32> -> vector<4x8x8xf32>
    "tpu.trace_stop"() : () -> ()
    %cst_26 = arith.constant dense<0xFF800000> : vector<4x8xf32>
    %54 = vector.multi_reduction <maximumf>, %53, %cst_26 [2] : vector<4x8x8xf32> to vector<4x8xf32>
    %55 = vector.shape_cast %54 : vector<4x8xf32> to vector<4x8x1xf32>
    %56 = vector.broadcast %55 : vector<4x8x1xf32> to vector<4x8x8xf32>
    %57 = arith.subf %53, %56 : vector<4x8x8xf32>
    %58 = math.exp %57 : vector<4x8x8xf32>
    %cst_27 = arith.constant dense<0.000000e+00> : vector<4x8xf32>
    %59 = vector.multi_reduction <add>, %58, %cst_27 [2] : vector<4x8x8xf32> to vector<4x8xf32>
    %60 = vector.shape_cast %59 : vector<4x8xf32> to vector<4x8x1xf32>
    %61 = tpu.reciprocal %60 {approx = true} : vector<4x8x1xf32> -> vector<4x8x1xf32>
    %62 = vector.broadcast %61 : vector<4x8x1xf32> to vector<4x8x8xf32>
    %63 = arith.mulf %58, %62 : vector<4x8x8xf32>
    %64 = arith.truncf %63 : vector<4x8x8xf32> to vector<4x8x8xbf16>
    "tpu.trace_start"() <{level = 10 : i32, message = "bij,bjd->bid"}> : () -> ()
    %cst_28 = arith.constant dense<0.000000e+00> : vector<4x8x16xf32>
    %65 = tpu.matmul %64, %52, %cst_28 {dimension_numbers = #tpu.dot_dimension_numbers<[2], [1], [1], [2], [0, 0, 0, 1, 1, 2], [0], [0]>} : vector<4x8x8xbf16>, vector<4x8x16xbf16>, vector<4x8x16xf32> -> vector<4x8x16xf32>
    "tpu.trace_stop"() : () -> ()
    %66 = vector.shape_cast %65 : vector<4x8x16xf32> to vector<2x2x8x16xf32>
    %67 = tpu.transpose %66, [0, 2, 1, 3] : vector<2x2x8x16xf32> -> vector<2x8x2x16xf32>
    %68 = vector.shape_cast %67 : vector<2x8x2x16xf32> to vector<16x32xf32>
    %69 = arith.truncf %68 : vector<16x32xf32> to vector<16x32xbf16>
    %c0_29 = arith.constant 0 : index
    %c0_30 = arith.constant 0 : index
    %c0_31 = arith.constant 0 : index
    %70 = vector.load %arg8[%c0_29, %c0_30, %c0_31] : memref<1x32x32xbf16, #tpu.memory_space<vmem>>, vector<1x32x32xbf16>
    %71 = vector.shape_cast %70 : vector<1x32x32xbf16> to vector<32x32xbf16>
    %cst_32 = arith.constant dense<0.000000e+00> : vector<16x32xf32>
    %72 = tpu.matmul %69, %71, %cst_32 {dimension_numbers = #tpu.dot_dimension_numbers<[1], [0], [0], [1], [0, 0, 1, 1], [], []>} : vector<16x32xbf16>, vector<32x32xbf16>, vector<16x32xf32> -> vector<16x32xf32>
    %73 = arith.addf %4, %72 : vector<16x32xf32>
    %c0_33 = arith.constant 0 : index
    %c0_34 = arith.constant 0 : index
    %c0_35 = arith.constant 0 : index
    %74 = vector.load %arg9[%c0_33, %c0_34, %c0_35] : memref<1x1x32xf32, #tpu.memory_space<vmem>>, vector<1x1x32xf32>
    %75 = vector.shape_cast %74 : vector<1x1x32xf32> to vector<1x32xf32>
    %c0_36 = arith.constant 0 : index
    %c0_37 = arith.constant 0 : index
    %c0_38 = arith.constant 0 : index
    %76 = vector.load %arg10[%c0_36, %c0_37, %c0_38] : memref<1x1x32xf32, #tpu.memory_space<vmem>>, vector<1x1x32xf32>
    %77 = vector.shape_cast %76 : vector<1x1x32xf32> to vector<1x32xf32>
    %cst_39 = arith.constant dense<0.000000e+00> : vector<16xf32>
    %78 = vector.multi_reduction <add>, %73, %cst_39 [1] : vector<16x32xf32> to vector<16xf32>
    %79 = vector.shape_cast %78 : vector<16xf32> to vector<16x1xf32>
    %cst_40 = arith.constant 3.200000e+01 : f32
    %80 = vector.broadcast %cst_40 : f32 to vector<16x1xf32>
    %81 = arith.divf %79, %80 : vector<16x1xf32>
    %82 = vector.broadcast %81 : vector<16x1xf32> to vector<16x32xf32>
    %83 = arith.subf %73, %82 : vector<16x32xf32>
    %84 = arith.mulf %83, %83 : vector<16x32xf32>
    %cst_41 = arith.constant dense<0.000000e+00> : vector<16xf32>
    %85 = vector.multi_reduction <add>, %84, %cst_41 [1] : vector<16x32xf32> to vector<16xf32>
    %86 = vector.shape_cast %85 : vector<16xf32> to vector<16x1xf32>
    %cst_42 = arith.constant 3.200000e+01 : f32
    %87 = vector.broadcast %cst_42 : f32 to vector<16x1xf32>
    %88 = arith.divf %86, %87 : vector<16x1xf32>
    %89 = vector.broadcast %81 : vector<16x1xf32> to vector<16x32xf32>
    %90 = arith.subf %73, %89 : vector<16x32xf32>
    %cst_43 = arith.constant 9.99999974E-6 : f32
    %91 = vector.broadcast %cst_43 : f32 to vector<16x1xf32>
    %92 = arith.addf %88, %91 : vector<16x1xf32>
    %93 = math.rsqrt %92 : vector<16x1xf32>
    %94 = vector.broadcast %93 : vector<16x1xf32> to vector<16x32xf32>
    %95 = arith.mulf %90, %94 : vector<16x32xf32>
    %96 = vector.broadcast %75 : vector<1x32xf32> to vector<16x32xf32>
    %97 = arith.mulf %95, %96 : vector<16x32xf32>
    %98 = vector.broadcast %77 : vector<1x32xf32> to vector<16x32xf32>
    %99 = arith.addf %97, %98 : vector<16x32xf32>
    %100 = arith.truncf %99 : vector<16x32xf32> to vector<16x32xbf16>
    %c0_44 = arith.constant 0 : index
    %c0_45 = arith.constant 0 : index
    %c0_46 = arith.constant 0 : index
    %101 = vector.load %arg11[%c0_44, %c0_45, %c0_46] : memref<1x32x128xbf16, #tpu.memory_space<vmem>>, vector<1x32x128xbf16>
    %102 = vector.shape_cast %101 : vector<1x32x128xbf16> to vector<32x128xbf16>
    %cst_47 = arith.constant dense<0.000000e+00> : vector<16x128xf32>
    %103 = tpu.matmul %100, %102, %cst_47 {dimension_numbers = #tpu.dot_dimension_numbers<[1], [0], [0], [1], [0, 0, 1, 1], [], []>} : vector<16x32xbf16>, vector<32x128xbf16>, vector<16x128xf32> -> vector<16x128xf32>
    %c0_48 = arith.constant 0 : index
    %c0_49 = arith.constant 0 : index
    %c0_50 = arith.constant 0 : index
    %104 = vector.load %arg12[%c0_48, %c0_49, %c0_50] : memref<1x1x128xf32, #tpu.memory_space<vmem>>, vector<1x1x128xf32>
    %105 = vector.shape_cast %104 : vector<1x1x128xf32> to vector<1x128xf32>
    %106 = vector.broadcast %105 : vector<1x128xf32> to vector<16x128xf32>
    %107 = arith.addf %103, %106 : vector<16x128xf32>
    %c0_51 = arith.constant 0 : index
    %c0_52 = arith.constant 0 : index
    %c0_53 = arith.constant 0 : index
    %108 = vector.load %arg13[%c0_51, %c0_52, %c0_53] : memref<1x32x128xbf16, #tpu.memory_space<vmem>>, vector<1x32x128xbf16>
    %109 = vector.shape_cast %108 : vector<1x32x128xbf16> to vector<32x128xbf16>
    %cst_54 = arith.constant dense<0.000000e+00> : vector<16x128xf32>
    %110 = tpu.matmul %100, %109, %cst_54 {dimension_numbers = #tpu.dot_dimension_numbers<[1], [0], [0], [1], [0, 0, 1, 1], [], []>} : vector<16x32xbf16>, vector<32x128xbf16>, vector<16x128xf32> -> vector<16x128xf32>
    %c0_55 = arith.constant 0 : index
    %c0_56 = arith.constant 0 : index
    %c0_57 = arith.constant 0 : index
    %111 = vector.load %arg14[%c0_55, %c0_56, %c0_57] : memref<1x1x128xf32, #tpu.memory_space<vmem>>, vector<1x1x128xf32>
    %112 = vector.shape_cast %111 : vector<1x1x128xf32> to vector<1x128xf32>
    %113 = vector.broadcast %112 : vector<1x128xf32> to vector<16x128xf32>
    %114 = arith.addf %110, %113 : vector<16x128xf32>
    %cst_58 = arith.constant 5.000000e-01 : f32
    %115 = vector.broadcast %cst_58 : f32 to vector<16x128xf32>
    %116 = arith.mulf %115, %114 : vector<16x128xf32>
    %cst_59 = arith.constant 0.707106769 : f32
    %117 = vector.broadcast %cst_59 : f32 to vector<16x128xf32>
    %118 = arith.mulf %114, %117 : vector<16x128xf32>
    %119 = math.erf %118 : vector<16x128xf32>
    %cst_60 = arith.constant 1.000000e+00 : f32
    %120 = vector.broadcast %cst_60 : f32 to vector<16x128xf32>
    %121 = arith.addf %120, %119 : vector<16x128xf32>
    %122 = arith.mulf %116, %121 : vector<16x128xf32>
    %123 = arith.mulf %107, %122 : vector<16x128xf32>
    %124 = arith.truncf %123 : vector<16x128xf32> to vector<16x128xbf16>
    %c0_61 = arith.constant 0 : index
    %c0_62 = arith.constant 0 : index
    %c0_63 = arith.constant 0 : index
    %125 = vector.load %arg15[%c0_61, %c0_62, %c0_63] : memref<1x128x32xbf16, #tpu.memory_space<vmem>>, vector<1x128x32xbf16>
    %126 = vector.shape_cast %125 : vector<1x128x32xbf16> to vector<128x32xbf16>
    %cst_64 = arith.constant dense<0.000000e+00> : vector<16x32xf32>
    %127 = tpu.matmul %124, %126, %cst_64 {dimension_numbers = #tpu.dot_dimension_numbers<[1], [0], [0], [1], [0, 0, 1, 1], [], []>} : vector<16x128xbf16>, vector<128x32xbf16>, vector<16x32xf32> -> vector<16x32xf32>
    %c0_65 = arith.constant 0 : index
    %c0_66 = arith.constant 0 : index
    %c0_67 = arith.constant 0 : index
    %128 = vector.load %arg16[%c0_65, %c0_66, %c0_67] : memref<1x1x32xf32, #tpu.memory_space<vmem>>, vector<1x1x32xf32>
    %129 = vector.shape_cast %128 : vector<1x1x32xf32> to vector<1x32xf32>
    %130 = vector.broadcast %129 : vector<1x32xf32> to vector<16x32xf32>
    %131 = arith.addf %127, %130 : vector<16x32xf32>
    %132 = arith.addf %131, %73 : vector<16x32xf32>
    %133 = vector.shape_cast %132 : vector<16x32xf32> to vector<2x8x32xf32>
    %c0_68 = arith.constant 0 : index
    %c0_69 = arith.constant 0 : index
    %c0_70 = arith.constant 0 : index
    %134 = vector.load %arg17[%c0_68, %c0_69, %c0_70] : memref<2x8x32xf32, #tpu.memory_space<vmem>>, vector<2x8x32xf32>
    tpu.vector_store %arg17[%c0_68, %c0_69, %c0_70], %133 {strides = array<i32>} : memref<2x8x32xf32, #tpu.memory_space<vmem>>, vector<2x8x32xf32>,
    return
  }
  func.func @transform_0(%arg0: i32, %arg1: i32) -> (i32, i32, i32) {
    %c0_i32 = arith.constant 0 : i32
    %c0_i32_0 = arith.constant 0 : i32
    %c0_i32_1 = arith.constant 0 : i32
    return %arg0, %c0_i32, %c0_i32_0 : i32, i32, i32
  }
  func.func @transform_1(%arg0: i32, %arg1: i32) -> (i32, i32, i32) {
    %c0_i32 = arith.constant 0 : i32
    %c0_i32_0 = arith.constant 0 : i32
    %c0_i32_1 = arith.constant 0 : i32
    return %arg1, %c0_i32, %c0_i32_0 : i32, i32, i32
  }
  func.func @transform_2(%arg0: i32, %arg1: i32) -> (i32, i32, i32) {
    %c0_i32 = arith.constant 0 : i32
    %c0_i32_0 = arith.constant 0 : i32
    %c0_i32_1 = arith.constant 0 : i32
    return %arg1, %c0_i32, %c0_i32_0 : i32, i32, i32
  }
  func.func @transform_3(%arg0: i32, %arg1: i32) -> (i32, i32, i32) {
    %c0_i32 = arith.constant 0 : i32
    %c0_i32_0 = arith.constant 0 : i32
    %c0_i32_1 = arith.constant 0 : i32
    return %arg1, %c0_i32, %c0_i32_0 : i32, i32, i32
  }
  func.func @transform_4(%arg0: i32, %arg1: i32) -> (i32, i32, i32) {
    %c0_i32 = arith.constant 0 : i32
    %c0_i32_0 = arith.constant 0 : i32
    %c0_i32_1 = arith.constant 0 : i32
    return %arg1, %c0_i32, %c0_i32_0 : i32, i32, i32
  }
  func.func @transform_5(%arg0: i32, %arg1: i32) -> (i32, i32, i32) {
    %c0_i32 = arith.constant 0 : i32
    %c0_i32_0 = arith.constant 0 : i32
    %c0_i32_1 = arith.constant 0 : i32
    return %arg1, %c0_i32, %c0_i32_0 : i32, i32, i32
  }
  func.func @transform_6(%arg0: i32, %arg1: i32) -> (i32, i32, i32) {
    %c0_i32 = arith.constant 0 : i32
    %c0_i32_0 = arith.constant 0 : i32
    %c0_i32_1 = arith.constant 0 : i32
    return %arg1, %c0_i32, %c0_i32_0 : i32, i32, i32
  }
  func.func @transform_7(%arg0: i32, %arg1: i32) -> (i32, i32, i32) {
    %c0_i32 = arith.constant 0 : i32
    %c0_i32_0 = arith.constant 0 : i32
    %c0_i32_1 = arith.constant 0 : i32
    return %arg1, %c0_i32, %c0_i32_0 : i32, i32, i32
  }
  func.func @transform_8(%arg0: i32, %arg1: i32) -> (i32, i32, i32) {
    %c0_i32 = arith.constant 0 : i32
    %c0_i32_0 = arith.constant 0 : i32
    %c0_i32_1 = arith.constant 0 : i32
    return %arg1, %c0_i32, %c0_i32_0 : i32, i32, i32
  }
  func.func @transform_9(%arg0: i32, %arg1: i32) -> (i32, i32, i32) {
    %c0_i32 = arith.constant 0 : i32
    %c0_i32_0 = arith.constant 0 : i32
    %c0_i32_1 = arith.constant 0 : i32
    return %arg1, %c0_i32, %c0_i32_0 : i32, i32, i32
  }
  func.func @transform_10(%arg0: i32, %arg1: i32) -> (i32, i32, i32) {
    %c0_i32 = arith.constant 0 : i32
    %c0_i32_0 = arith.constant 0 : i32
    %c0_i32_1 = arith.constant 0 : i32
    return %arg1, %c0_i32, %c0_i32_0 : i32, i32, i32
  }
  func.func @transform_11(%arg0: i32, %arg1: i32) -> (i32, i32, i32) {
    %c0_i32 = arith.constant 0 : i32
    %c0_i32_0 = arith.constant 0 : i32
    %c0_i32_1 = arith.constant 0 : i32
    return %arg1, %c0_i32, %c0_i32_0 : i32, i32, i32
  }
  func.func @transform_12(%arg0: i32, %arg1: i32) -> (i32, i32, i32) {
    %c0_i32 = arith.constant 0 : i32
    %c0_i32_0 = arith.constant 0 : i32
    %c0_i32_1 = arith.constant 0 : i32
    return %arg1, %c0_i32, %c0_i32_0 : i32, i32, i32
  }
  func.func @transform_13(%arg0: i32, %arg1: i32) -> (i32, i32, i32) {
    %c0_i32 = arith.constant 0 : i32
    %c0_i32_0 = arith.constant 0 : i32
    %c0_i32_1 = arith.constant 0 : i32
    return %arg1, %c0_i32, %c0_i32_0 : i32, i32, i32
  }
  func.func @transform_14(%arg0: i32, %arg1: i32) -> (i32, i32, i32) {
    %c0_i32 = arith.constant 0 : i32
    %c0_i32_0 = arith.constant 0 : i32
    %c0_i32_1 = arith.constant 0 : i32
    return %arg1, %c0_i32, %c0_i32_0 : i32, i32, i32
  }
  func.func @transform_15(%arg0: i32, %arg1: i32) -> (i32, i32, i32) {
    %c0_i32 = arith.constant 0 : i32
    %c0_i32_0 = arith.constant 0 : i32
    %c0_i32_1 = arith.constant 0 : i32
    return %arg0, %c0_i32, %c0_i32_0 : i32, i32, i32
  }
}

</mosaic_0001>

<llo_original>
// kernel: tpu_custom_call.1
$region0: #{tpu_custom_call.1}
  #allocation0 [shape = 'u32[]', space=smem, size = 0x4, offset = 0x4, fixed_abs, tag = 'smem constant byte address 0x4 - core index']
  #allocation1 [shape = 'u32[72,128]{1,0:T(1,128)}', space=vmem, size = 0x9000, scoped, tag = 'internal scratch']
  %s0 = inlined_call_operand.vmem [shape: f32[4,8,32], index: 0, kind: input, shape index: {}]
  %s1 = inlined_call_operand.hbm [shape: f32[2,1,32], index: 1, kind: input, shape index: {}]
  %s2 = inlined_call_operand.hbm [shape: f32[2,1,32], index: 2, kind: input, shape index: {}]
  %s3 = inlined_call_operand.vmem [shape: bf16[2,32,32], index: 3, kind: input, shape index: {}]
  %s4 = inlined_call_operand.vmem [shape: bf16[2,32,32], index: 4, kind: input, shape index: {}]
  %s5 = inlined_call_operand.vmem [shape: bf16[2,32,32], index: 5, kind: input, shape index: {}]
  %s6 = inlined_call_operand.vmem [shape: bf16[2,32,32], index: 6, kind: input, shape index: {}]
  %s7 = inlined_call_operand.vmem [shape: f32[2,1,32], index: 7, kind: input, shape index: {}]
  %s8 = inlined_call_operand.vmem [shape: f32[2,1,32], index: 8, kind: input, shape index: {}]
  %s9 = inlined_call_operand.hbm [shape: bf16[2,32,128], index: 9, kind: input, shape index: {}]
  %s10 = inlined_call_operand.vmem [shape: f32[2,1,128], index: 10, kind: input, shape index: {}]
  %s11 = inlined_call_operand.hbm [shape: bf16[2,32,128], index: 11, kind: input, shape index: {}]
  %s12 = inlined_call_operand.vmem [shape: f32[2,1,128], index: 12, kind: input, shape index: {}]
  %s13 = inlined_call_operand.vmem [shape: bf16[2,128,32], index: 13, kind: input, shape index: {}]
  %s14 = inlined_call_operand.vmem [shape: f32[2,1,32], index: 14, kind: input, shape index: {}]
  %s15 = inlined_call_operand.hbm [shape: f32[4,8,32], index: 15, kind: output, shape index: {}]
  %s16 = sld [smem:[#allocation0]]
  $region113: #{tpu_custom_call.1} parent=0
    _
  %s18 = ssub.s32 1, %s16
  %s19 = scalar_select 0, %s18, %s16
  $region1: #{tpu_custom_call.1} parent=0
    #allocation2 [shape = 'u8[1024]{0}', space=vmem, size = 0x400, scoped, tag = 'input window, operand 1']
    #allocation3 [shape = 's32[2]{0}', space=sflag, size = 0x8, scoped, tag = 'scoped memory for tpu_custom_call.1']
    #allocation4 [shape = 's32[2]{0}', space=sflag, size = 0x8, scoped, tag = 'scoped memory for tpu_custom_call.1']
    #allocation5 [shape = 'u8[1024]{0}', space=vmem, size = 0x400, scoped, tag = 'input window, operand 2']
    #allocation6 [shape = 's32[2]{0}', space=sflag, size = 0x8, scoped, tag = 'scoped memory for tpu_custom_call.1']
    #allocation7 [shape = 'u8[16384]{0}', space=vmem, size = 0x4000, scoped, tag = 'input window, operand 9']
    #allocation8 [shape = 'u8[16384]{0}', space=vmem, size = 0x4000, scoped, tag = 'input window, operand 11']
    #allocation9 [shape = 's32[2]{0}', space=sflag, size = 0x8, scoped, tag = 'scoped memory for tpu_custom_call.1']
    #allocation10 [shape = 'u8[16384]{0}', space=vmem, size = 0x4000, scoped, tag = 'output window, operand 0']
    %20 = vsyncpa [#allocation3], 0
    %s21 = scalar_lea.sflag [#allocation3], 1
    %22 = vsyncpa %s21, 0
    %23 = vsyncpa [#allocation6], 0
    %s24 = scalar_lea.sflag [#allocation6], 1
    %25 = vsyncpa %s24, 0
    %26 = vsyncpa [#allocation9], 0
    %s27 = scalar_lea.sflag [#allocation9], 1
    %28 = vsyncpa %s27, 0
    %29 = vsyncpa [#allocation4], 0
    %s30 = scalar_lea.sflag [#allocation4], 1
    %31 = vsyncpa %s30, 0
    loop: start=0, step=1, limit=6
    $region2: #{tpu_custom_call.1} parent=1 // loop_pre_header
      _
    $region3: #{tpu_custom_call.1} parent=1 // loop_header
      %s33 = sphi 0, %s37
      %p34 = scmp.ge.s32.totalorder %s33, 6
      %s40 = sphi 0, %s52
      %s41 = sphi 0, %s48
      %s42 = sphi 0, %s40
      %s43 = sphi 0, %s41
      %s44 = sphi 0, %s42
      %s45 = sphi 0, %s43
      %s55 = sphi 0, %s57
      %s58 = sphi 0, %s55
      %s59 = sphi 0, %s58
      %s75 = sphi 0, %s59
      %s81 = sphi 0, %s83
      %s84 = sphi 0, %s81
      %s85 = sphi 0, %s84
      %s101 = sphi 0, %s85
      %s107 = sphi 0, %s109
      %s110 = sphi 0, %s107
      %s111 = sphi 0, %s110
      %s127 = sphi 0, %s111
      %s133 = sphi 0, %s135
      %s136 = sphi 0, %s133
      %s137 = sphi 0, %s136
      %s153 = sphi 0, %s137
      %s159 = sphi 0, %s161
      %s162 = sphi 0, %s159
      %s163 = sphi 0, %s162
      %s179 = sphi 0, %s163
      %s185 = sphi 0, %s187
      %s188 = sphi 0, %s185
      %s189 = sphi 0, %s188
      %s205 = sphi 0, %s189
      %s211 = sphi 0, %s213
      %s214 = sphi 0, %s211
      %s215 = sphi 0, %s214
      %s231 = sphi 0, %s215
      %s237 = sphi 0, %s239
      %s240 = sphi 0, %s237
      %s241 = sphi 0, %s240
      %s257 = sphi 0, %s241
      %s263 = sphi 0, %s265
      %s266 = sphi 0, %s263
      %s267 = sphi 0, %s266
      %s283 = sphi 0, %s267
      %s289 = sphi 0, %s291
      %s292 = sphi 0, %s289
      %s293 = sphi 0, %s292
      %s309 = sphi 0, %s293
      %s315 = sphi 0, %s317
      %s318 = sphi 0, %s315
      %s319 = sphi 0, %s318
      %s335 = sphi 0, %s319
      %s341 = sphi 0, %s343
      %s344 = sphi 0, %s341
      %s345 = sphi 0, %s344
      %s361 = sphi 0, %s345
      %s367 = sphi 0, %s369
      %s370 = sphi 0, %s367
      %s371 = sphi 0, %s370
      %s387 = sphi 0, %s371
      %s393 = sphi 0, %s395
      %s396 = sphi 0, %s393
      %s397 = sphi 0, %s396
      %s413 = sphi 0, %s397
      %s419 = sphi 0, %s421
      %s422 = sphi 0, %s419
      %s423 = sphi 0, %s422
      %s439 = sphi 0, %s423
      %s445 = sphi 0, %s447
      %s448 = sphi 0, %s445
      %s449 = sphi 0, %s448
      %s465 = sphi 0, %s449
    $region4: #{tpu_custom_call.1} parent=1 // loop_header_branch
      %36 = sbr.rel (%p34) target = $region8
    $region5: #{tpu_custom_call.1} parent=1 // loop_body
      %s38 = ssub.s32 %s33, 1
      %s39 = ssub.s32 %s33, 2
      %s46 = sadd.s32 1, %s41
      %p47 = scmp.ge.s32.totalorder %s46, 2
      %s48 = scalar_select %p47, 0, %s46
      %s49 = sadd.s32 1, %s40
      %s50 = scalar_select %p47, %s49, %s40
      %p51 = scmp.ge.s32.totalorder %s50, 2
      %s52 = scalar_select %p51, 0, %s50
      %s53 = ssub.s32 %s40, %s52
      %p54 = scmp.eq.s32.totalorder %s53, 0
      %s56 = sadd.s32 %s55, 1
      %s57 = scalar_select %p54, %s55, %s56
      %p60 = pneg %p54
      %p61 = scmp.eq.s32.totalorder %s33, 3
      %p62 = por %p60, %p61
      %p63 = scmp.ne.s32.totalorder %s55, %s58
      %p64 = scmp.eq.s32.totalorder %s33, 0
      %p65 = por %p63, %p64
      %p66 = scmp.ne.s32.totalorder %s55, %s58
      %p67 = scmp.eq.s32.totalorder %s38, 3
      %p68 = por %p66, %p67
      %p69 = scmp.ne.s32.totalorder %s58, %s59
      %p70 = scmp.eq.s32.totalorder %s38, 0
      %p71 = por %p69, %p70
      %p72 = scmp.ne.s32.totalorder %s58, %s59
      %p73 = scmp.eq.s32.totalorder %s39, 3
      %p74 = por %p72, %p73
      %p76 = scmp.ne.s32.totalorder %s59, %s75
      %p77 = scmp.eq.s32.totalorder %s39, 0
      %p78 = por %p76, %p77
      %s79 = ssub.s32 %s41, %s48
      %p80 = scmp.eq.s32.totalorder %s79, 0
      %s82 = sadd.s32 %s81, 1
      %s83 = scalar_select %p80, %s81, %s82
      %p86 = pneg %p80
      %p87 = scmp.eq.s32.totalorder %s33, 3
      %p88 = por %p86, %p87
      %p89 = scmp.ne.s32.totalorder %s81, %s84
      %p90 = scmp.eq.s32.totalorder %s33, 0
      %p91 = por %p89, %p90
      %p92 = scmp.ne.s32.totalorder %s81, %s84
      %p93 = scmp.eq.s32.totalorder %s38, 3
      %p94 = por %p92, %p93
      %p95 = scmp.ne.s32.totalorder %s84, %s85
      %p96 = scmp.eq.s32.totalorder %s38, 0
      %p97 = por %p95, %p96
      %p98 = scmp.ne.s32.totalorder %s84, %s85
      %p99 = scmp.eq.s32.totalorder %s39, 3
      %p100 = por %p98, %p99
      %p102 = scmp.ne.s32.totalorder %s85, %s101
      %p103 = scmp.eq.s32.totalorder %s39, 0
      %p104 = por %p102, %p103
      %s105 = ssub.s32 %s41, %s48
      %p106 = scmp.eq.s32.totalorder %s105, 0
      %s108 = sadd.s32 %s107, 1
      %s109 = scalar_select %p106, %s107, %s108
      %p112 = pneg %p106
      %p113 = scmp.eq.s32.totalorder %s33, 3
      %p114 = por %p112, %p113
      %p115 = scmp.ne.s32.totalorder %s107, %s110
      %p116 = scmp.eq.s32.totalorder %s33, 0
      %p117 = por %p115, %p116
      %p118 = scmp.ne.s32.totalorder %s107, %s110
      %p119 = scmp.eq.s32.totalorder %s38, 3
      %p120 = por %p118, %p119
      %p121 = scmp.ne.s32.totalorder %s110, %s111
      %p122 = scmp.eq.s32.totalorder %s38, 0
      %p123 = por %p121, %p122
      %p124 = scmp.ne.s32.totalorder %s110, %s111
      %p125 = scmp.eq.s32.totalorder %s39, 3
      %p126 = por %p124, %p125
      %p128 = scmp.ne.s32.totalorder %s111, %s127
      %p129 = scmp.eq.s32.totalorder %s39, 0
      %p130 = por %p128, %p129
      %s131 = ssub.s32 %s41, %s48
      %p132 = scmp.eq.s32.totalorder %s131, 0
      %s134 = sadd.s32 %s133, 1
      %s135 = scalar_select %p132, %s133, %s134
      %p138 = pneg %p132
      %p139 = scmp.eq.s32.totalorder %s33, 3
      %p140 = por %p138, %p139
      %p141 = scmp.ne.s32.totalorder %s133, %s136
      %p142 = scmp.eq.s32.totalorder %s33, 0
      %p143 = por %p141, %p142
      %p144 = scmp.ne.s32.totalorder %s133, %s136
      %p145 = scmp.eq.s32.totalorder %s38, 3
      %p146 = por %p144, %p145
      %p147 = scmp.ne.s32.totalorder %s136, %s137
      %p148 = scmp.eq.s32.totalorder %s38, 0
      %p149 = por %p147, %p148
      %p150 = scmp.ne.s32.totalorder %s136, %s137
      %p151 = scmp.eq.s32.totalorder %s39, 3
      %p152 = por %p150, %p151
      %p154 = scmp.ne.s32.totalorder %s137, %s153
      %p155 = scmp.eq.s32.totalorder %s39, 0
      %p156 = por %p154, %p155
      %s157 = ssub.s32 %s41, %s48
      %p158 = scmp.eq.s32.totalorder %s157, 0
      %s160 = sadd.s32 %s159, 1
      %s161 = scalar_select %p158, %s159, %s160
      %p164 = pneg %p158
      %p165 = scmp.eq.s32.totalorder %s33, 3
      %p166 = por %p164, %p165
      %p167 = scmp.ne.s32.totalorder %s159, %s162
      %p168 = scmp.eq.s32.totalorder %s33, 0
      %p169 = por %p167, %p168
      %p170 = scmp.ne.s32.totalorder %s159, %s162
      %p171 = scmp.eq.s32.totalorder %s38, 3
      %p172 = por %p170, %p171
      %p173 = scmp.ne.s32.totalorder %s162, %s163
      %p174 = scmp.eq.s32.totalorder %s38, 0
      %p175 = por %p173, %p174
      %p176 = scmp.ne.s32.totalorder %s162, %s163
      %p177 = scmp.eq.s32.totalorder %s39, 3
      %p178 = por %p176, %p177
      %p180 = scmp.ne.s32.totalorder %s163, %s179
      %p181 = scmp.eq.s32.totalorder %s39, 0
      %p182 = por %p180, %p181
      %s183 = ssub.s32 %s41, %s48
      %p184 = scmp.eq.s32.totalorder %s183, 0
      %s186 = sadd.s32 %s185, 1
      %s187 = scalar_select %p184, %s185, %s186
      %p190 = pneg %p184
      %p191 = scmp.eq.s32.totalorder %s33, 3
      %p192 = por %p190, %p191
      %p193 = scmp.ne.s32.totalorder %s185, %s188
      %p194 = scmp.eq.s32.totalorder %s33, 0
      %p195 = por %p193, %p194
      %p196 = scmp.ne.s32.totalorder %s185, %s188
      %p197 = scmp.eq.s32.totalorder %s38, 3
      %p198 = por %p196, %p197
      %p199 = scmp.ne.s32.totalorder %s188, %s189
      %p200 = scmp.eq.s32.totalorder %s38, 0
      %p201 = por %p199, %p200
      %p202 = scmp.ne.s32.totalorder %s188, %s189
      %p203 = scmp.eq.s32.totalorder %s39, 3
      %p204 = por %p202, %p203
      %p206 = scmp.ne.s32.totalorder %s189, %s205
      %p207 = scmp.eq.s32.totalorder %s39, 0
      %p208 = por %p206, %p207
      %s209 = ssub.s32 %s41, %s48
      %p210 = scmp.eq.s32.totalorder %s209, 0
      %s212 = sadd.s32 %s211, 1
      %s213 = scalar_select %p210, %s211, %s212
      %p216 = pneg %p210
      %p217 = scmp.eq.s32.totalorder %s33, 3
      %p218 = por %p216, %p217
      %p219 = scmp.ne.s32.totalorder %s211, %s214
      %p220 = scmp.eq.s32.totalorder %s33, 0
      %p221 = por %p219, %p220
      %p222 = scmp.ne.s32.totalorder %s211, %s214
      %p223 = scmp.eq.s32.totalorder %s38, 3
      %p224 = por %p222, %p223
      %p225 = scmp.ne.s32.totalorder %s214, %s215
      %p226 = scmp.eq.s32.totalorder %s38, 0
      %p227 = por %p225, %p226
      %p228 = scmp.ne.s32.totalorder %s214, %s215
      %p229 = scmp.eq.s32.totalorder %s39, 3
      %p230 = por %p228, %p229
      %p232 = scmp.ne.s32.totalorder %s215, %s231
      %p233 = scmp.eq.s32.totalorder %s39, 0
      %p234 = por %p232, %p233
      %s235 = ssub.s32 %s41, %s48
      %p236 = scmp.eq.s32.totalorder %s235, 0
      %s238 = sadd.s32 %s237, 1
      %s239 = scalar_select %p236, %s237, %s238
      %p242 = pneg %p236
      %p243 = scmp.eq.s32.totalorder %s33, 3
      %p244 = por %p242, %p243
      %p245 = scmp.ne.s32.totalorder %s237, %s240
      %p246 = scmp.eq.s32.totalorder %s33, 0
      %p247 = por %p245, %p246
      %p248 = scmp.ne.s32.totalorder %s237, %s240
      %p249 = scmp.eq.s32.totalorder %s38, 3
      %p250 = por %p248, %p249
      %p251 = scmp.ne.s32.totalorder %s240, %s241
      %p252 = scmp.eq.s32.totalorder %s38, 0
      %p253 = por %p251, %p252
      %p254 = scmp.ne.s32.totalorder %s240, %s241
      %p255 = scmp.eq.s32.totalorder %s39, 3
      %p256 = por %p254, %p255
      %p258 = scmp.ne.s32.totalorder %s241, %s257
      %p259 = scmp.eq.s32.totalorder %s39, 0
      %p260 = por %p258, %p259
      %s261 = ssub.s32 %s41, %s48
      %p262 = scmp.eq.s32.totalorder %s261, 0
      %s264 = sadd.s32 %s263, 1
      %s265 = scalar_select %p262, %s263, %s264
      %p268 = pneg %p262
      %p269 = scmp.eq.s32.totalorder %s33, 3
      %p270 = por %p268, %p269
      %p271 = scmp.ne.s32.totalorder %s263, %s266
      %p272 = scmp.eq.s32.totalorder %s33, 0
      %p273 = por %p271, %p272
      %p274 = scmp.ne.s32.totalorder %s263, %s266
      %p275 = scmp.eq.s32.totalorder %s38, 3
      %p276 = por %p274, %p275
      %p277 = scmp.ne.s32.totalorder %s266, %s267
      %p278 = scmp.eq.s32.totalorder %s38, 0
      %p279 = por %p277, %p278
      %p280 = scmp.ne.s32.totalorder %s266, %s267
      %p281 = scmp.eq.s32.totalorder %s39, 3
      %p282 = por %p280, %p281
      %p284 = scmp.ne.s32.totalorder %s267, %s283
      %p285 = scmp.eq.s32.totalorder %s39, 0
      %p286 = por %p284, %p285
      %s287 = ssub.s32 %s41, %s48
      %p288 = scmp.eq.s32.totalorder %s287, 0
      %s290 = sadd.s32 %s289, 1
      %s291 = scalar_select %p288, %s289, %s290
      %p294 = pneg %p288
      %p295 = scmp.eq.s32.totalorder %s33, 3
      %p296 = por %p294, %p295
      %p297 = scmp.ne.s32.totalorder %s289, %s292
      %p298 = scmp.eq.s32.totalorder %s33, 0
      %p299 = por %p297, %p298
      %p300 = scmp.ne.s32.totalorder %s289, %s292
      %p301 = scmp.eq.s32.totalorder %s38, 3
      %p302 = por %p300, %p301
      %p303 = scmp.ne.s32.totalorder %s292, %s293
      %p304 = scmp.eq.s32.totalorder %s38, 0
      %p305 = por %p303, %p304
      %p306 = scmp.ne.s32.totalorder %s292, %s293
      %p307 = scmp.eq.s32.totalorder %s39, 3
      %p308 = por %p306, %p307
      %p310 = scmp.ne.s32.totalorder %s293, %s309
      %p311 = scmp.eq.s32.totalorder %s39, 0
      %p312 = por %p310, %p311
      %s313 = ssub.s32 %s41, %s48
      %p314 = scmp.eq.s32.totalorder %s313, 0
      %s316 = sadd.s32 %s315, 1
      %s317 = scalar_select %p314, %s315, %s316
      %p320 = pneg %p314
      %p321 = scmp.eq.s32.totalorder %s33, 3
      %p322 = por %p320, %p321
      %p323 = scmp.ne.s32.totalorder %s315, %s318
      %p324 = scmp.eq.s32.totalorder %s33, 0
      %p325 = por %p323, %p324
      %p326 = scmp.ne.s32.totalorder %s315, %s318
      %p327 = scmp.eq.s32.totalorder %s38, 3
      %p328 = por %p326, %p327
      %p329 = scmp.ne.s32.totalorder %s318, %s319
      %p330 = scmp.eq.s32.totalorder %s38, 0
      %p331 = por %p329, %p330
      %p332 = scmp.ne.s32.totalorder %s318, %s319
      %p333 = scmp.eq.s32.totalorder %s39, 3
      %p334 = por %p332, %p333
      %p336 = scmp.ne.s32.totalorder %s319, %s335
      %p337 = scmp.eq.s32.totalorder %s39, 0
      %p338 = por %p336, %p337
      %s339 = ssub.s32 %s41, %s48
      %p340 = scmp.eq.s32.totalorder %s339, 0
      %s342 = sadd.s32 %s341, 1
      %s343 = scalar_select %p340, %s341, %s342
      %p346 = pneg %p340
      %p347 = scmp.eq.s32.totalorder %s33, 3
      %p348 = por %p346, %p347
      %p349 = scmp.ne.s32.totalorder %s341, %s344
      %p350 = scmp.eq.s32.totalorder %s33, 0
      %p351 = por %p349, %p350
      %p352 = scmp.ne.s32.totalorder %s341, %s344
      %p353 = scmp.eq.s32.totalorder %s38, 3
      %p354 = por %p352, %p353
      %p355 = scmp.ne.s32.totalorder %s344, %s345
      %p356 = scmp.eq.s32.totalorder %s38, 0
      %p357 = por %p355, %p356
      %p358 = scmp.ne.s32.totalorder %s344, %s345
      %p359 = scmp.eq.s32.totalorder %s39, 3
      %p360 = por %p358, %p359
      %p362 = scmp.ne.s32.totalorder %s345, %s361
      %p363 = scmp.eq.s32.totalorder %s39, 0
      %p364 = por %p362, %p363
      %s365 = ssub.s32 %s41, %s48
      %p366 = scmp.eq.s32.totalorder %s365, 0
      %s368 = sadd.s32 %s367, 1
      %s369 = scalar_select %p366, %s367, %s368
      %p372 = pneg %p366
      %p373 = scmp.eq.s32.totalorder %s33, 3
      %p374 = por %p372, %p373
      %p375 = scmp.ne.s32.totalorder %s367, %s370
      %p376 = scmp.eq.s32.totalorder %s33, 0
      %p377 = por %p375, %p376
      %p378 = scmp.ne.s32.totalorder %s367, %s370
      %p379 = scmp.eq.s32.totalorder %s38, 3
      %p380 = por %p378, %p379
      %p381 = scmp.ne.s32.totalorder %s370, %s371
      %p382 = scmp.eq.s32.totalorder %s38, 0
      %p383 = por %p381, %p382
      %p384 = scmp.ne.s32.totalorder %s370, %s371
      %p385 = scmp.eq.s32.totalorder %s39, 3
      %p386 = por %p384, %p385
      %p388 = scmp.ne.s32.totalorder %s371, %s387
      %p389 = scmp.eq.s32.totalorder %s39, 0
      %p390 = por %p388, %p389
      %s391 = ssub.s32 %s41, %s48
      %p392 = scmp.eq.s32.totalorder %s391, 0
      %s394 = sadd.s32 %s393, 1
      %s395 = scalar_select %p392, %s393, %s394
      %p398 = pneg %p392
      %p399 = scmp.eq.s32.totalorder %s33, 3
      %p400 = por %p398, %p399
      %p401 = scmp.ne.s32.totalorder %s393, %s396
      %p402 = scmp.eq.s32.totalorder %s33, 0
      %p403 = por %p401, %p402
      %p404 = scmp.ne.s32.totalorder %s393, %s396
      %p405 = scmp.eq.s32.totalorder %s38, 3
      %p406 = por %p404, %p405
      %p407 = scmp.ne.s32.totalorder %s396, %s397
      %p408 = scmp.eq.s32.totalorder %s38, 0
      %p409 = por %p407, %p408
      %p410 = scmp.ne.s32.totalorder %s396, %s397
      %p411 = scmp.eq.s32.totalorder %s39, 3
      %p412 = por %p410, %p411
      %p414 = scmp.ne.s32.totalorder %s397, %s413
      %p415 = scmp.eq.s32.totalorder %s39, 0
      %p416 = por %p414, %p415
      %s417 = ssub.s32 %s41, %s48
      %p418 = scmp.eq.s32.totalorder %s417, 0
      %s420 = sadd.s32 %s419, 1
      %s421 = scalar_select %p418, %s419, %s420
      %p424 = pneg %p418
      %p425 = scmp.eq.s32.totalorder %s33, 3
      %p426 = por %p424, %p425
      %p427 = scmp.ne.s32.totalorder %s419, %s422
      %p428 = scmp.eq.s32.totalorder %s33, 0
      %p429 = por %p427, %p428
      %p430 = scmp.ne.s32.totalorder %s419, %s422
      %p431 = scmp.eq.s32.totalorder %s38, 3
      %p432 = por %p430, %p431
      %p433 = scmp.ne.s32.totalorder %s422, %s423
      %p434 = scmp.eq.s32.totalorder %s38, 0
      %p435 = por %p433, %p434
      %p436 = scmp.ne.s32.totalorder %s422, %s423
      %p437 = scmp.eq.s32.totalorder %s39, 3
      %p438 = por %p436, %p437
      %p440 = scmp.ne.s32.totalorder %s423, %s439
      %p441 = scmp.eq.s32.totalorder %s39, 0
      %p442 = por %p440, %p441
      %s443 = ssub.s32 %s40, %s52
      %p444 = scmp.eq.s32.totalorder %s443, 0
      %s446 = sadd.s32 %s445, 1
      %s447 = scalar_select %p444, %s445, %s446
      %p450 = pneg %p444
      %p451 = scmp.eq.s32.totalorder %s33, 3
      %p452 = por %p450, %p451
      %p453 = scmp.ne.s32.totalorder %s445, %s448
      %p454 = scmp.eq.s32.totalorder %s33, 0
      %p455 = por %p453, %p454
      %p456 = scmp.ne.s32.totalorder %s445, %s448
      %p457 = scmp.eq.s32.totalorder %s38, 3
      %p458 = por %p456, %p457
      %p459 = scmp.ne.s32.totalorder %s448, %s449
      %p460 = scmp.eq.s32.totalorder %s38, 0
      %p461 = por %p459, %p460
      %p462 = scmp.ne.s32.totalorder %s448, %s449
      %p463 = scmp.eq.s32.totalorder %s39, 3
      %p464 = por %p462, %p463
      %p466 = scmp.ne.s32.totalorder %s449, %s465
      %p467 = scmp.eq.s32.totalorder %s39, 0
      %p468 = por %p466, %p467
      %p469 = scmp.le.s32.totalorder 1, %s33
      %p470 = scmp.lt.s32.totalorder %s33, 5
      %p471 = pnand %p469, %p470
      %p472 = pneg %p471
      // Predicated region
      $region9: #{tpu_custom_call.1} parent=5 // pred_check
        _
      $region10: #{tpu_custom_call.1} parent=5 // pred_check_branch
        %474 = sbr.rel (%p471) target = $region12
      $region11: #{tpu_custom_call.1} parent=5 // pred_region
        %s475 = ssub.s32 %s33, 1
      $region12: #{tpu_custom_call.1} parent=5 // pred_fallthru
        _
      %p476 = scmp.lt.s32.totalorder %s33, 4
      // Predicated region
      $region13: #{tpu_custom_call.1} parent=5 // pred_check
        %p477 = pneg %p476
      $region14: #{tpu_custom_call.1} parent=5 // pred_check_branch
        %479 = sbr.rel (%p477) target = $region16
      $region15: #{tpu_custom_call.1} parent=5 // pred_region
        // Predicated region
        $region17: #{tpu_custom_call.1} parent=15 // pred_check
          %p480 = pneg %p65
        $region18: #{tpu_custom_call.1} parent=15 // pred_check_branch
          %482 = sbr.rel (%p480) target = $region20
        $region19: #{tpu_custom_call.1} parent=15 // pred_region
          %s483 = smul.u32 2, %s40
          %p484 = scmp.lt.s32.totalorder %s483, 3
          %s485 = scalar_select %p484, %s483, 3
          %s486 = smul.addr %s485, 8
          %s487 = scalar_lea.vmem %s0, %s486
          %s488 = smul.u32 2, %s40
        $region20: #{tpu_custom_call.1} parent=15 // pred_fallthru
          _
        // Predicated region
        $region21: #{tpu_custom_call.1} parent=15 // pred_check
          %p489 = pneg %p91
        $region22: #{tpu_custom_call.1} parent=15 // pred_check_branch
          %491 = sbr.rel (%p489) target = $region24
        $region23: #{tpu_custom_call.1} parent=15 // pred_region
          %s492 = sand.u32 %s81, 1
          %s493 = scalar_lea.sflag [#allocation3], %s492
          %s494 = sand.u32 %s81, 1
          %s495 = scalar_lea.vmem [#allocation2], %s494
          %497 = vsyncadd %s493, 0
          %s498 = scalar_lea.hbm %s1, %s41
          %s500 = sshll.u32 %s498, 4
          %s501 = int_to_ptr.hbm [resolvable:$true] %s500
          %s502 = sshll.u32 %s495, 4
          %s503 = int_to_ptr.vmem [resolvable:$true] %s502
          %505 = dma.hbm_to_vmem [thread:$0]  %s501, 16, %s503, %s493
        $region24: #{tpu_custom_call.1} parent=15 // pred_fallthru
          _
        // Predicated region
        $region25: #{tpu_custom_call.1} parent=15 // pred_check
          %p506 = pneg %p117
        $region26: #{tpu_custom_call.1} parent=15 // pred_check_branch
          %508 = sbr.rel (%p506) target = $region28
        $region27: #{tpu_custom_call.1} parent=15 // pred_region
          %s509 = sand.u32 %s33, 1
          %s510 = scalar_lea.sflag [#allocation6], %s509
          %s511 = sand.u32 %s107, 1
          %s512 = scalar_lea.vmem [#allocation5], %s511
          %514 = vsyncadd %s510, 0
          %s515 = scalar_lea.hbm %s2, %s41
          %s517 = sshll.u32 %s515, 4
          %s518 = int_to_ptr.hbm [resolvable:$true] %s517
          %s519 = sshll.u32 %s512, 4
          %s520 = int_to_ptr.vmem [resolvable:$true] %s519
          %522 = dma.hbm_to_vmem [thread:$0]  %s518, 16, %s520, %s510
        $region28: #{tpu_custom_call.1} parent=15 // pred_fallthru
          _
        // Predicated region
        $region29: #{tpu_custom_call.1} parent=15 // pred_check
          %p523 = pneg %p143
        $region30: #{tpu_custom_call.1} parent=15 // pred_check_branch
          %525 = sbr.rel (%p523) target = $region32
        $region31: #{tpu_custom_call.1} parent=15 // pred_region
          %p526 = scmp.lt.s32.totalorder %s41, 1
          %s527 = scalar_select %p526, %s41, 1
          %s528 = smul.addr %s527, 4
          %s529 = smul.addr %s528, 4
          %s530 = scalar_lea.vmem %s3, %s529
        $region32: #{tpu_custom_call.1} parent=15 // pred_fallthru
          _
        // Predicated region
        $region33: #{tpu_custom_call.1} parent=15 // pred_check
          %p531 = pneg %p169
        $region34: #{tpu_custom_call.1} parent=15 // pred_check_branch
          %533 = sbr.rel (%p531) target = $region36
        $region35: #{tpu_custom_call.1} parent=15 // pred_region
          %p534 = scmp.lt.s32.totalorder %s41, 1
          %s535 = scalar_select %p534, %s41, 1
          %s536 = smul.addr %s535, 4
          %s537 = smul.addr %s536, 4
          %s538 = scalar_lea.vmem %s4, %s537
        $region36: #{tpu_custom_call.1} parent=15 // pred_fallthru
          _
        // Predicated region
        $region37: #{tpu_custom_call.1} parent=15 // pred_check
          %p539 = pneg %p195
        $region38: #{tpu_custom_call.1} parent=15 // pred_check_branch
          %541 = sbr.rel (%p539) target = $region40
        $region39: #{tpu_custom_call.1} parent=15 // pred_region
          %p542 = scmp.lt.s32.totalorder %s41, 1
          %s543 = scalar_select %p542, %s41, 1
          %s544 = smul.addr %s543, 4
          %s545 = smul.addr %s544, 4
          %s546 = scalar_lea.vmem %s5, %s545
        $region40: #{tpu_custom_call.1} parent=15 // pred_fallthru
          _
        // Predicated region
        $region41: #{tpu_custom_call.1} parent=15 // pred_check
          %p547 = pneg %p221
        $region42: #{tpu_custom_call.1} parent=15 // pred_check_branch
          %549 = sbr.rel (%p547) target = $region44
        $region43: #{tpu_custom_call.1} parent=15 // pred_region
          %p550 = scmp.lt.s32.totalorder %s41, 1
          %s551 = scalar_select %p550, %s41, 1
          %s552 = smul.addr %s551, 4
          %s553 = smul.addr %s552, 4
          %s554 = scalar_lea.vmem %s6, %s553
        $region44: #{tpu_custom_call.1} parent=15 // pred_fallthru
          _
        // Predicated region
        $region45: #{tpu_custom_call.1} parent=15 // pred_check
          %p555 = pneg %p247
        $region46: #{tpu_custom_call.1} parent=15 // pred_check_branch
          %557 = sbr.rel (%p555) target = $region48
        $region47: #{tpu_custom_call.1} parent=15 // pred_region
          %p558 = scmp.lt.s32.totalorder %s41, 1
          %s559 = scalar_select %p558, %s41, 1
          %s560 = scalar_lea.vmem %s7, %s559
        $region48: #{tpu_custom_call.1} parent=15 // pred_fallthru
          _
        // Predicated region
        $region49: #{tpu_custom_call.1} parent=15 // pred_check
          %p561 = pneg %p273
        $region50: #{tpu_custom_call.1} parent=15 // pred_check_branch
          %563 = sbr.rel (%p561) target = $region52
        $region51: #{tpu_custom_call.1} parent=15 // pred_region
          %p564 = scmp.lt.s32.totalorder %s41, 1
          %s565 = scalar_select %p564, %s41, 1
          %s566 = scalar_lea.vmem %s8, %s565
        $region52: #{tpu_custom_call.1} parent=15 // pred_fallthru
          _
        // Predicated region
        $region53: #{tpu_custom_call.1} parent=15 // pred_check
          %p567 = pneg %p299
        $region54: #{tpu_custom_call.1} parent=15 // pred_check_branch
          %569 = sbr.rel (%p567) target = $region56
        $region55: #{tpu_custom_call.1} parent=15 // pred_region
          %s570 = sand.u32 %s33, 1
          %s571 = scalar_lea.sflag [#allocation6], %s570
          %s572 = sand.u32 %s289, 1
          %s573 = smul.addr %s572, 16
          %s574 = scalar_lea.vmem [#allocation7], %s573
          %576 = vsyncadd %s571, 0
          %s577 = smul.addr %s41, 4
          %s578 = smul.addr %s577, 4
          %s579 = scalar_lea.hbm %s9, %s578
          %s580 = sshll.u32 %s579, 4
          %s581 = int_to_ptr.hbm [resolvable:$true] %s580
          %s582 = sshll.u32 %s574, 4
          %s583 = int_to_ptr.vmem [resolvable:$true] %s582
          %588 = dma.hbm_to_vmem [thread:$0]  %s581, 256, %s583, %s571, 64, 64, 4
        $region56: #{tpu_custom_call.1} parent=15 // pred_fallthru
          _
        // Predicated region
        $region57: #{tpu_custom_call.1} parent=15 // pred_check
          %p589 = pneg %p325
        $region58: #{tpu_custom_call.1} parent=15 // pred_check_branch
          %591 = sbr.rel (%p589) target = $region60
        $region59: #{tpu_custom_call.1} parent=15 // pred_region
          %p592 = scmp.lt.s32.totalorder %s41, 1
          %s593 = scalar_select %p592, %s41, 1
          %s594 = scalar_lea.vmem %s10, %s593
        $region60: #{tpu_custom_call.1} parent=15 // pred_fallthru
          _
        // Predicated region
        $region61: #{tpu_custom_call.1} parent=15 // pred_check
          %p595 = pneg %p351
        $region62: #{tpu_custom_call.1} parent=15 // pred_check_branch
          %597 = sbr.rel (%p595) target = $region64
        $region63: #{tpu_custom_call.1} parent=15 // pred_region
          %s598 = sand.u32 %s341, 1
          %s599 = scalar_lea.sflag [#allocation9], %s598
          %s600 = sand.u32 %s341, 1
          %s601 = smul.addr %s600, 16
          %s602 = scalar_lea.vmem [#allocation8], %s601
          %604 = vsyncadd %s599, 0
          %s605 = smul.addr %s41, 4
          %s606 = smul.addr %s605, 4
          %s607 = scalar_lea.hbm %s11, %s606
          %s608 = sshll.u32 %s607, 4
          %s609 = int_to_ptr.hbm [resolvable:$true] %s608
          %s610 = sshll.u32 %s602, 4
          %s611 = int_to_ptr.vmem [resolvable:$true] %s610
          %616 = dma.hbm_to_vmem [thread:$0]  %s609, 256, %s611, %s599, 64, 64, 4
        $region64: #{tpu_custom_call.1} parent=15 // pred_fallthru
          _
        // Predicated region
        $region65: #{tpu_custom_call.1} parent=15 // pred_check
          %p617 = pneg %p377
        $region66: #{tpu_custom_call.1} parent=15 // pred_check_branch
          %619 = sbr.rel (%p617) target = $region68
        $region67: #{tpu_custom_call.1} parent=15 // pred_region
          %p620 = scmp.lt.s32.totalorder %s41, 1
          %s621 = scalar_select %p620, %s41, 1
          %s622 = scalar_lea.vmem %s12, %s621
        $region68: #{tpu_custom_call.1} parent=15 // pred_fallthru
          _
        // Predicated region
        $region69: #{tpu_custom_call.1} parent=15 // pred_check
          %p623 = pneg %p403
        $region70: #{tpu_custom_call.1} parent=15 // pred_check_branch
          %625 = sbr.rel (%p623) target = $region72
        $region71: #{tpu_custom_call.1} parent=15 // pred_region
          %p626 = scmp.lt.s32.totalorder %s41, 1
          %s627 = scalar_select %p626, %s41, 1
          %s628 = smul.addr %s627, 16
          %s629 = smul.addr %s628, 4
          %s630 = scalar_lea.vmem %s13, %s629
        $region72: #{tpu_custom_call.1} parent=15 // pred_fallthru
          _
        // Predicated region
        $region73: #{tpu_custom_call.1} parent=15 // pred_check
          %p631 = pneg %p429
        $region74: #{tpu_custom_call.1} parent=15 // pred_check_branch
          %633 = sbr.rel (%p631) target = $region76
        $region75: #{tpu_custom_call.1} parent=15 // pred_region
          %p634 = scmp.lt.s32.totalorder %s41, 1
          %s635 = scalar_select %p634, %s41, 1
          %s636 = scalar_lea.vmem %s14, %s635
        $region76: #{tpu_custom_call.1} parent=15 // pred_fallthru
          _
      $region16: #{tpu_custom_call.1} parent=5 // pred_fallthru
        _
      %p637 = scmp.le.s32.totalorder 1, %s33
      %p638 = scmp.lt.s32.totalorder %s33, 5
      %p639 = pnand %p637, %p638
      %p640 = pneg %p639
      // Predicated region
      $region77: #{tpu_custom_call.1} parent=5 // pred_check
        _
      $region78: #{tpu_custom_call.1} parent=5 // pred_check_branch
        %642 = sbr.rel (%p639) target = $region80
      $region79: #{tpu_custom_call.1} parent=5 // pred_region
        %s643 = ssub.s32 %s33, 1
        %s644 = sand.u32 %s84, 1
        %s645 = scalar_lea.sflag [#allocation3], %s644
        %s646 = sand.u32 %s84, 1
        %s647 = scalar_lea.vmem [#allocation2], %s646
        // Predicated region
        $region81: #{tpu_custom_call.1} parent=79 // pred_check
          %p648 = pneg %p97
        $region82: #{tpu_custom_call.1} parent=79 // pred_check_branch
          %650 = sbr.rel (%p648) target = $region84
        $region83: #{tpu_custom_call.1} parent=79 // pred_region
          %652 = dma.done %s645, 16
        $region84: #{tpu_custom_call.1} parent=79 // pred_fallthru
          _
        %s653 = sand.u32 %s38, 1
        %s654 = scalar_lea.sflag [#allocation6], %s653
        %s655 = sand.u32 %s110, 1
        %s656 = scalar_lea.vmem [#allocation5], %s655
        // Predicated region
        $region85: #{tpu_custom_call.1} parent=79 // pred_check
          %p657 = pneg %p123
        $region86: #{tpu_custom_call.1} parent=79 // pred_check_branch
          %659 = sbr.rel (%p657) target = $region88
        $region87: #{tpu_custom_call.1} parent=79 // pred_region
          %661 = dma.done %s654, 16
        $region88: #{tpu_custom_call.1} parent=79 // pred_fallthru
          _
        %s662 = sand.u32 %s38, 1
        %s663 = scalar_lea.sflag [#allocation6], %s662
        %s664 = sand.u32 %s292, 1
        %s665 = smul.addr %s664, 16
        %s666 = scalar_lea.vmem [#allocation7], %s665
        // Predicated region
        $region89: #{tpu_custom_call.1} parent=79 // pred_check
          %p667 = pneg %p305
        $region90: #{tpu_custom_call.1} parent=79 // pred_check_branch
          %669 = sbr.rel (%p667) target = $region92
        $region91: #{tpu_custom_call.1} parent=79 // pred_region
          %671 = dma.done %s663, 256
        $region92: #{tpu_custom_call.1} parent=79 // pred_fallthru
          _
        %s672 = sand.u32 %s344, 1
        %s673 = scalar_lea.sflag [#allocation9], %s672
        %s674 = sand.u32 %s344, 1
        %s675 = smul.addr %s674, 16
        %s676 = scalar_lea.vmem [#allocation8], %s675
        // Predicated region
        $region93: #{tpu_custom_call.1} parent=79 // pred_check
          %p677 = pneg %p357
        $region94: #{tpu_custom_call.1} parent=79 // pred_check_branch
          %679 = sbr.rel (%p677) target = $region96
        $region95: #{tpu_custom_call.1} parent=79 // pred_region
          %681 = dma.done %s673, 256
        $region96: #{tpu_custom_call.1} parent=79 // pred_fallthru
          _
        %s682 = smul.u32 2, %s42
        %p683 = scmp.lt.s32.totalorder %s682, 3
        %s684 = scalar_select %p683, %s682, 3
        %s685 = smul.addr %s684, 8
        %s686 = scalar_lea.vmem %s0, %s685
        %p687 = pneg %p71
        %p688 = pneg %p68
        %s689 = sand.u32 %s84, 1
        %s690 = scalar_lea.sflag [#allocation3], %s689
        %s691 = sand.u32 %s84, 1
        %s692 = scalar_lea.vmem [#allocation2], %s691
        %p693 = pneg %p97
        %p694 = pneg %p94
        %s695 = sand.u32 %s38, 1
        %s696 = scalar_lea.sflag [#allocation6], %s695
        %s697 = sand.u32 %s110, 1
        %s698 = scalar_lea.vmem [#allocation5], %s697
        %p699 = pneg %p123
        %p700 = pneg %p120
        %p701 = scmp.lt.s32.totalorder %s43, 1
        %s702 = scalar_select %p701, %s43, 1
        %s703 = smul.addr %s702, 4
        %s704 = smul.addr %s703, 4
        %s705 = scalar_lea.vmem %s3, %s704
        %p706 = pneg %p149
        %p707 = pneg %p146
        %p708 = scmp.lt.s32.totalorder %s43, 1
        %s709 = scalar_select %p708, %s43, 1
        %s710 = smul.addr %s709, 4
        %s711 = smul.addr %s710, 4
        %s712 = scalar_lea.vmem %s4, %s711
        %p713 = pneg %p175
        %p714 = pneg %p172
        %p715 = scmp.lt.s32.totalorder %s43, 1
        %s716 = scalar_select %p715, %s43, 1
        %s717 = smul.addr %s716, 4
        %s718 = smul.addr %s717, 4
        %s719 = scalar_lea.vmem %s5, %s718
        %p720 = pneg %p201
        %p721 = pneg %p198
        %p722 = scmp.lt.s32.totalorder %s43, 1
        %s723 = scalar_select %p722, %s43, 1
        %s724 = smul.addr %s723, 4
        %s725 = smul.addr %s724, 4
        %s726 = scalar_lea.vmem %s6, %s725
        %p727 = pneg %p227
        %p728 = pneg %p224
        %p729 = scmp.lt.s32.totalorder %s43, 1
        %s730 = scalar_select %p729, %s43, 1
        %s731 = scalar_lea.vmem %s7, %s730
        %p732 = pneg %p253
        %p733 = pneg %p250
        %p734 = scmp.lt.s32.totalorder %s43, 1
        %s735 = scalar_select %p734, %s43, 1
        %s736 = scalar_lea.vmem %s8, %s735
        %p737 = pneg %p279
        %p738 = pneg %p276
        %s739 = sand.u32 %s38, 1
        %s740 = scalar_lea.sflag [#allocation6], %s739
        %s741 = sand.u32 %s292, 1
        %s742 = smul.addr %s741, 16
        %s743 = scalar_lea.vmem [#allocation7], %s742
        %p744 = pneg %p305
        %p745 = pneg %p302
        %p746 = scmp.lt.s32.totalorder %s43, 1
        %s747 = scalar_select %p746, %s43, 1
        %s748 = scalar_lea.vmem %s10, %s747
        %p749 = pneg %p331
        %p750 = pneg %p328
        %s751 = sand.u32 %s344, 1
        %s752 = scalar_lea.sflag [#allocation9], %s751
        %s753 = sand.u32 %s344, 1
        %s754 = smul.addr %s753, 16
        %s755 = scalar_lea.vmem [#allocation8], %s754
        %p756 = pneg %p357
        %p757 = pneg %p354
        %p758 = scmp.lt.s32.totalorder %s43, 1
        %s759 = scalar_select %p758, %s43, 1
        %s760 = scalar_lea.vmem %s12, %s759
        %p761 = pneg %p383
        %p762 = pneg %p380
        %p763 = scmp.lt.s32.totalorder %s43, 1
        %s764 = scalar_select %p763, %s43, 1
        %s765 = smul.addr %s764, 16
        %s766 = smul.addr %s765, 4
        %s767 = scalar_lea.vmem %s13, %s766
        %p768 = pneg %p409
        %p769 = pneg %p406
        %p770 = scmp.lt.s32.totalorder %s43, 1
        %s771 = scalar_select %p770, %s43, 1
        %s772 = scalar_lea.vmem %s14, %s771
        %p773 = pneg %p435
        %p774 = pneg %p432
        %p775 = pneg %p461
        %p776 = pneg %p458
        %s777 = sand.u32 %s448, 1
        %s778 = scalar_lea.sflag [#allocation4], %s777
        %s779 = sand.u32 %s448, 1
        %s780 = smul.addr %s779, 16
        %s781 = scalar_lea.vmem [#allocation10], %s780
        %s782 = smul.u32 2, %s42
        %p783 = scmp.lt.s32.totalorder %s782, 3
        %s784 = scalar_select %p783, %s782, 3
        %s785 = smul.addr %s784, 8
        %s786 = scalar_lea.vmem %s0, %s785
        %s787 = smul.u32 2, %s42
        %p788 = scmp.lt.s32.totalorder %s43, 1
        %s789 = scalar_select %p788, %s43, 1
        %s790 = smul.addr %s789, 4
        %s791 = smul.addr %s790, 4
        %s792 = scalar_lea.vmem %s3, %s791
        %p793 = scmp.lt.s32.totalorder %s43, 1
        %s794 = scalar_select %p793, %s43, 1
        %s795 = smul.addr %s794, 4
        %s796 = smul.addr %s795, 4
        %s797 = scalar_lea.vmem %s4, %s796
        %p798 = scmp.lt.s32.totalorder %s43, 1
        %s799 = scalar_select %p798, %s43, 1
        %s800 = smul.addr %s799, 4
        %s801 = smul.addr %s800, 4
        %s802 = scalar_lea.vmem %s5, %s801
        %p803 = scmp.lt.s32.totalorder %s43, 1
        %s804 = scalar_select %p803, %s43, 1
        %s805 = smul.addr %s804, 4
        %s806 = smul.addr %s805, 4
        %s807 = scalar_lea.vmem %s6, %s806
        %p808 = scmp.lt.s32.totalorder %s43, 1
        %s809 = scalar_select %p808, %s43, 1
        %s810 = scalar_lea.vmem %s7, %s809
        %p811 = scmp.lt.s32.totalorder %s43, 1
        %s812 = scalar_select %p811, %s43, 1
        %s813 = scalar_lea.vmem %s8, %s812
        %p814 = scmp.lt.s32.totalorder %s43, 1
        %s815 = scalar_select %p814, %s43, 1
        %s816 = scalar_lea.vmem %s10, %s815
        %p817 = scmp.lt.s32.totalorder %s43, 1
        %s818 = scalar_select %p817, %s43, 1
        %s819 = scalar_lea.vmem %s12, %s818
        %p820 = scmp.lt.s32.totalorder %s43, 1
        %s821 = scalar_select %p820, %s43, 1
        %s822 = smul.addr %s821, 16
        %s823 = smul.addr %s822, 4
        %s824 = scalar_lea.vmem %s13, %s823
        %p825 = scmp.lt.s32.totalorder %s43, 1
        %s826 = scalar_select %p825, %s43, 1
        %s827 = scalar_lea.vmem %s14, %s826
        %s828 = smul.u32 2, %s42
        %p830 = scmp.eq.s32.totalorder %s43, 0
        // Predicated region
        $region97: #{tpu_custom_call.1} parent=79 // pred_check
          %p831 = pneg %p830
        $region98: #{tpu_custom_call.1} parent=79 // pred_check_branch
          %833 = sbr.rel (%p831) target = $region100
        $region99: #{tpu_custom_call.1} parent=79 // pred_region
          %v834 = vld [vmem:[%s786] sm:$0xff]
          %v835 = vld [vmem:[%s786 + $0x8] sm:$0xff]
          %vm836 = vcmask 261120
          %837 = vst.msk [vmem:[%s781] sm:$0xff] %vm836, %v834
          %838 = vst.msk [vmem:[%s781 + $0x8] sm:$0xff] %vm836, %v835
        $region100: #{tpu_custom_call.1} parent=79 // pred_fallthru
          _
        %v839 = vld [vmem:[%s781] sm:$0xff]
        %v840 = vld [vmem:[%s781 + $0x8] sm:$0xff]
        %v841 = vld [vmem:[%s647] sm:$0x1]
        %v842 = vld [vmem:[%s656] sm:$0x1]
        %vm843 = vcmask 261120
        %v844 = vsel %vm843, %v839, 0.0
        %845 = vadd.xlane.f32.xlu0 %v844
        %v846 = vpop.xlane.xlu0 %845
        %v847 = vsel %vm843, %v840, 0.0
        %848 = vadd.xlane.f32.xlu0 %v847
        %v849 = vpop.xlane.xlu0 %848
        %v850 = vrcp.pop 32.0
        %v851 = vmul.f32 32.0, %v850
        %v852 = vsub.f32 1.0, %v851
        %v853 = vmul.f32 %v850, %v852
        %v854 = vadd.f32 %v850, %v853
        %vm855 = vweird.f32 %v850
        %v856 = vsel %vm855, %v850, %v854
        %v857 = vmul.f32 %v846, %v856
        %v858 = vmul.f32 %v849, %v856
        %v859 = vsub.f32 %v839, %v857
        %v860 = vsub.f32 %v840, %v858
        %v861 = vmul.f32 %v859, %v859
        %v862 = vmul.f32 %v860, %v860
        %v863 = vsel %vm843, %v861, 0.0
        %864 = vadd.xlane.f32.xlu0 %v863
        %v865 = vpop.xlane.xlu0 %864
        %v866 = vsel %vm843, %v862, 0.0
        %867 = vadd.xlane.f32.xlu0 %v866
        %v868 = vpop.xlane.xlu0 %867
        %v869 = vmul.f32 %v865, %v856
        %v870 = vmul.f32 %v868, %v856
        %v871 = vadd.f32 %v869, 1e-05
        %v872 = vadd.f32 %v870, 1e-05
        %v873 = vrsqrt.pop %v871
        %v874 = vmul.f32 %v873, %v871
        %v875 = vmul.f32 %v874, %v873
        %v876 = vmul.f32 0.5, %v875
        %v877 = vsub.f32 1.5, %v876
        %v878 = vmul.f32 %v873, %v877
        %vm879 = vweird.f32 %v871
        %vm880 = vweird.f32 %v873
        %vm881 = vmor %vm879, %vm880
        %v882 = vsel %vm881, %v873, %v878
        %v883 = vrsqrt.pop %v872
        %v884 = vmul.f32 %v883, %v872
        %v885 = vmul.f32 %v884, %v883
        %v886 = vmul.f32 0.5, %v885
        %v887 = vsub.f32 1.5, %v886
        %v888 = vmul.f32 %v883, %v887
        %vm889 = vweird.f32 %v872
        %vm890 = vweird.f32 %v883
        %vm891 = vmor %vm889, %vm890
        %v892 = vsel %vm891, %v883, %v888
        %v893 = vmul.f32 %v859, %v882
        %v894 = vmul.f32 %v860, %v892
        %v896 = vperm.slane %v841, 0
        %v898 = vmul.f32 %v893, %v896
        %v899 = vmul.f32 %v894, %v896
        %v901 = vperm.slane %v842, 0
        %v903 = vadd.f32 %v898, %v901
        %v904 = vadd.f32 %v899, %v901
        %v905 = vpack.c.bf16 %v904, %v903
        %v906 = vld [vmem:[%s792] sm:$0xf]
        %v907 = vld [vmem:[%s792 + $0x4] sm:$0xf]
        %v908 = vld [vmem:[%s792 + $0x8] sm:$0xf]
        %v909 = vld [vmem:[%s792 + $0xc] sm:$0xf]
        %v914 = vunpack.c.l.b16 %v906
        %v915 = vunpack.c.l.b16 %v907
        %v916 = vunpack.c.l.b16 %v908
        %v917 = vunpack.c.l.b16 %v909
        %v918 = vpack.c.b16 %v915, %v914
        %v919 = vpack.c.b16 %v917, %v916
        %v923 = vsel %vm843, %v905, 0
        %925 = vmatpush.bf16.msra.mxu0 0
        %926 = vmatpush.bf16.msra.mxu0 0
        %927 = vmatpush.bf16.msra.mxu0 0
        %928 = vmatpush.bf16.msra.mxu0 0
        %929 = vmatpush.bf16.msra.mxu0 0
        %930 = vmatpush.bf16.msra.mxu0 0
        %931 = vmatpush.bf16.msra.mxu0 %v919
        %932 = vmatpush.bf16.msra.mxu0 %v918
        %933 = vmatmul.bf16.gmra.mxu0 %v923
        %v934 = vpop.f32.mrf.mxu0
        %v935 = vadd.f32 0.0, %v934
        %v936 = vpop.f32.mrf.mxu0
        %v937 = vadd.f32 0.0, %v936
        %938 = vdwg.mxu0
        %v939 = vld [vmem:[%s797] sm:$0xf]
        %v940 = vld [vmem:[%s797 + $0x4] sm:$0xf]
        %v941 = vld [vmem:[%s797 + $0x8] sm:$0xf]
        %v942 = vld [vmem:[%s797 + $0xc] sm:$0xf]
        %v947 = vunpack.c.l.b16 %v939
        %v948 = vunpack.c.l.b16 %v940
        %v949 = vunpack.c.l.b16 %v941
        %v950 = vunpack.c.l.b16 %v942
        %v951 = vpack.c.b16 %v948, %v947
        %v952 = vpack.c.b16 %v950, %v949
        %955 = vmatpush.bf16.msra.mxu0 0
        %956 = vmatpush.bf16.msra.mxu0 0
        %957 = vmatpush.bf16.msra.mxu0 0
        %958 = vmatpush.bf16.msra.mxu0 0
        %959 = vmatpush.bf16.msra.mxu0 0
        %960 = vmatpush.bf16.msra.mxu0 0
        %961 = vmatpush.bf16.msra.mxu0 %v952
        %962 = vmatpush.bf16.msra.mxu0 %v951
        %963 = vmatmul.bf16.gmra.mxu0 %v923
        %v964 = vpop.f32.mrf.mxu0
        %v965 = vadd.f32 0.0, %v964
        %v966 = vpop.f32.mrf.mxu0
        %v967 = vadd.f32 0.0, %v966
        %968 = vdwg.mxu0
        %v969 = vld [vmem:[%s802] sm:$0xf]
        %v970 = vld [vmem:[%s802 + $0x4] sm:$0xf]
        %v971 = vld [vmem:[%s802 + $0x8] sm:$0xf]
        %v972 = vld [vmem:[%s802 + $0xc] sm:$0xf]
        %v977 = vunpack.c.l.b16 %v969
        %v978 = vunpack.c.l.b16 %v970
        %v979 = vunpack.c.l.b16 %v971
        %v980 = vunpack.c.l.b16 %v972
        %v981 = vpack.c.b16 %v978, %v977
        %v982 = vpack.c.b16 %v980, %v979
        %985 = vmatpush.bf16.msra.mxu0 0
        %986 = vmatpush.bf16.msra.mxu0 0
        %987 = vmatpush.bf16.msra.mxu0 0
        %988 = vmatpush.bf16.msra.mxu0 0
        %989 = vmatpush.bf16.msra.mxu0 0
        %990 = vmatpush.bf16.msra.mxu0 0
        %991 = vmatpush.bf16.msra.mxu0 %v982
        %992 = vmatpush.bf16.msra.mxu0 %v981
        %993 = vmatmul.bf16.gmra.mxu0 %v923
        %v994 = vpop.f32.mrf.mxu0
        %v995 = vadd.f32 0.0, %v994
        %v996 = vpop.f32.mrf.mxu0
        %v997 = vadd.f32 0.0, %v996
        %998 = vdwg.mxu0
        %1001 = vrot.lane.b32.xlu0 %v935, 112
        %v1002 = vpop.permute.xlu0 %1001
        %1003 = vrot.lane.b32.xlu0 %v937, 112
        %v1004 = vpop.permute.xlu0 %1003
        %v1007 = vrot.slane %v935, 4
        %vm1008 = vcmask 1047556
        %v1009 = vsel %vm1008, 0.0, %v1007
        %v1011 = vunpack.c.l.s4 1983009808
        %v1012 = vunpack.c.0.s8 %v1011
        %v1013 = vperm.slane %v935, %v1012
        %v1015 = vunpack.c.l.s4 1983009808
        %v1016 = vunpack.c.0.s8 %v1015
        %v1017 = vperm.slane %v1009, %v1016
        %v1018 = vrot.slane %v1002, 4
        %v1019 = vsel %vm1008, 0.0, %v1018
        %v1021 = vunpack.c.l.s4 1983009808
        %v1022 = vunpack.c.0.s8 %v1021
        %v1023 = vperm.slane %v1002, %v1022
        %v1025 = vunpack.c.l.s4 1983009808
        %v1026 = vunpack.c.0.s8 %v1025
        %v1027 = vperm.slane %v1019, %v1026
        %v1028 = vrot.slane %v1023, 4
        %v1029 = vsel %vm1008, %v1028, %v1013
        %v1030 = vrot.slane %v1013, 4
        %v1031 = vsel %vm1008, %v1023, %v1030
        %v1033 = vunpack.c.l.s4 1934713408
        %v1034 = vunpack.c.0.s8 %v1033
        %v1035 = vperm.slane %v1029, %v1034
        %v1037 = vunpack.c.l.s4 1934713408
        %v1038 = vunpack.c.0.s8 %v1037
        %v1039 = vperm.slane %v1031, %v1038
        %v1040 = vrot.slane %v1027, 4
        %v1041 = vsel %vm1008, %v1040, %v1017
        %v1042 = vrot.slane %v1017, 4
        %v1043 = vsel %vm1008, %v1027, %v1042
        %v1045 = vunpack.c.l.s4 1934713408
        %v1046 = vunpack.c.0.s8 %v1045
        %v1047 = vperm.slane %v1041, %v1046
        %v1049 = vunpack.c.l.s4 1934713408
        %v1050 = vunpack.c.0.s8 %v1049
        %v1051 = vperm.slane %v1043, %v1050
        %v1052 = vrot.slane %v1035, 4
        %v1053 = vsel %vm1008, 0.0, %v1052
        %v1054 = vrot.slane %v1039, 4
        %v1055 = vsel %vm1008, 0.0, %v1054
        %v1056 = vrot.slane %v1047, 4
        %v1057 = vsel %vm1008, 0.0, %v1056
        %v1058 = vrot.slane %v1051, 4
        %v1059 = vsel %vm1008, 0.0, %v1058
        %v1060 = vrot.slane %v937, 4
        %v1061 = vsel %vm1008, 0.0, %v1060
        %v1063 = vunpack.c.l.s4 1983009808
        %v1064 = vunpack.c.0.s8 %v1063
        %v1065 = vperm.slane %v937, %v1064
        %v1067 = vunpack.c.l.s4 1983009808
        %v1068 = vunpack.c.0.s8 %v1067
        %v1069 = vperm.slane %v1061, %v1068
        %v1070 = vrot.slane %v1004, 4
        %v1071 = vsel %vm1008, 0.0, %v1070
        %v1073 = vunpack.c.l.s4 1983009808
        %v1074 = vunpack.c.0.s8 %v1073
        %v1075 = vperm.slane %v1004, %v1074
        %v1077 = vunpack.c.l.s4 1983009808
        %v1078 = vunpack.c.0.s8 %v1077
        %v1079 = vperm.slane %v1071, %v1078
        %v1080 = vrot.slane %v1075, 4
        %v1081 = vsel %vm1008, %v1080, %v1065
        %v1082 = vrot.slane %v1065, 4
        %v1083 = vsel %vm1008, %v1075, %v1082
        %v1085 = vunpack.c.l.s4 1934713408
        %v1086 = vunpack.c.0.s8 %v1085
        %v1087 = vperm.slane %v1081, %v1086
        %v1089 = vunpack.c.l.s4 1934713408
        %v1090 = vunpack.c.0.s8 %v1089
        %v1091 = vperm.slane %v1083, %v1090
        %v1092 = vrot.slane %v1079, 4
        %v1093 = vsel %vm1008, %v1092, %v1069
        %v1094 = vrot.slane %v1069, 4
        %v1095 = vsel %vm1008, %v1079, %v1094
        %v1097 = vunpack.c.l.s4 1934713408
        %v1098 = vunpack.c.0.s8 %v1097
        %v1099 = vperm.slane %v1093, %v1098
        %v1101 = vunpack.c.l.s4 1934713408
        %v1102 = vunpack.c.0.s8 %v1101
        %v1103 = vperm.slane %v1095, %v1102
        %v1104 = vrot.slane %v1087, 4
        %v1105 = vsel %vm1008, 0.0, %v1104
        %v1106 = vrot.slane %v1091, 4
        %v1107 = vsel %vm1008, 0.0, %v1106
        %v1108 = vrot.slane %v1099, 4
        %v1109 = vsel %vm1008, 0.0, %v1108
        %v1110 = vrot.slane %v1103, 4
        %v1111 = vsel %vm1008, 0.0, %v1110
        %v1112 = vsel %vm1008, %v1054, %v1035
        %v1114 = vunpack.c.l.s4 1983009808
        %v1115 = vunpack.c.0.s8 %v1114
        %v1116 = vperm.slane %v1112, %v1115
        %v1117 = vrot.slane %v1055, 4
        %v1118 = vsel %vm1008, %v1117, %v1053
        %v1120 = vunpack.c.l.s4 1983009808
        %v1121 = vunpack.c.0.s8 %v1120
        %v1122 = vperm.slane %v1118, %v1121
        %v1123 = vsel %vm1008, %v1058, %v1047
        %v1125 = vunpack.c.l.s4 1983009808
        %v1126 = vunpack.c.0.s8 %v1125
        %v1127 = vperm.slane %v1123, %v1126
        %v1128 = vrot.slane %v1059, 4
        %v1129 = vsel %vm1008, %v1128, %v1057
        %v1131 = vunpack.c.l.s4 1983009808
        %v1132 = vunpack.c.0.s8 %v1131
        %v1133 = vperm.slane %v1129, %v1132
        %v1134 = vrot.slane %v1122, 4
        %v1135 = vsel %vm1008, %v1134, %v1116
        %v1137 = vunpack.c.l.s4 1934713408
        %v1138 = vunpack.c.0.s8 %v1137
        %v1139 = vperm.slane %v1135, %v1138
        %v1140 = vrot.slane %v1133, 4
        %v1141 = vsel %vm1008, %v1140, %v1127
        %v1143 = vunpack.c.l.s4 1934713408
        %v1144 = vunpack.c.0.s8 %v1143
        %v1145 = vperm.slane %v1141, %v1144
        %v1146 = vrot.slane %v1145, 4
        %v1147 = vsel %vm1008, %v1146, %v1139
        %v1148 = vrot.slane %v1139, 4
        %v1149 = vsel %vm1008, %v1145, %v1148
        %v1150 = vsel %vm1008, %v1106, %v1087
        %v1152 = vunpack.c.l.s4 1983009808
        %v1153 = vunpack.c.0.s8 %v1152
        %v1154 = vperm.slane %v1150, %v1153
        %v1155 = vrot.slane %v1107, 4
        %v1156 = vsel %vm1008, %v1155, %v1105
        %v1158 = vunpack.c.l.s4 1983009808
        %v1159 = vunpack.c.0.s8 %v1158
        %v1160 = vperm.slane %v1156, %v1159
        %v1161 = vsel %vm1008, %v1110, %v1099
        %v1163 = vunpack.c.l.s4 1983009808
        %v1164 = vunpack.c.0.s8 %v1163
        %v1165 = vperm.slane %v1161, %v1164
        %v1166 = vrot.slane %v1111, 4
        %v1167 = vsel %vm1008, %v1166, %v1109
        %v1169 = vunpack.c.l.s4 1983009808
        %v1170 = vunpack.c.0.s8 %v1169
        %v1171 = vperm.slane %v1167, %v1170
        %v1172 = vrot.slane %v1160, 4
        %v1173 = vsel %vm1008, %v1172, %v1154
        %v1175 = vunpack.c.l.s4 1934713408
        %v1176 = vunpack.c.0.s8 %v1175
        %v1177 = vperm.slane %v1173, %v1176
        %v1178 = vrot.slane %v1171, 4
        %v1179 = vsel %vm1008, %v1178, %v1165
        %v1181 = vunpack.c.l.s4 1934713408
        %v1182 = vunpack.c.0.s8 %v1181
        %v1183 = vperm.slane %v1179, %v1182
        %v1184 = vrot.slane %v1183, 4
        %v1185 = vsel %vm1008, %v1184, %v1177
        %v1186 = vrot.slane %v1177, 4
        %v1187 = vsel %vm1008, %v1183, %v1186
        %v1188 = vpack.c.bf16 %v1147, %v1147
        %v1189 = vpack.c.bf16 %v1149, %v1149
        %v1190 = vpack.c.bf16 %v1185, %v1185
        %v1191 = vpack.c.bf16 %v1187, %v1187
        %1194 = vrot.lane.b32.xlu0 %v965, 112
        %v1195 = vpop.permute.xlu0 %1194
        %1196 = vrot.lane.b32.xlu0 %v967, 112
        %v1197 = vpop.permute.xlu0 %1196
        %v1200 = vrot.slane %v965, 4
        %v1201 = vsel %vm1008, 0.0, %v1200
        %v1203 = vunpack.c.l.s4 1983009808
        %v1204 = vunpack.c.0.s8 %v1203
        %v1205 = vperm.slane %v965, %v1204
        %v1207 = vunpack.c.l.s4 1983009808
        %v1208 = vunpack.c.0.s8 %v1207
        %v1209 = vperm.slane %v1201, %v1208
        %v1210 = vrot.slane %v1195, 4
        %v1211 = vsel %vm1008, 0.0, %v1210
        %v1213 = vunpack.c.l.s4 1983009808
        %v1214 = vunpack.c.0.s8 %v1213
        %v1215 = vperm.slane %v1195, %v1214
        %v1217 = vunpack.c.l.s4 1983009808
        %v1218 = vunpack.c.0.s8 %v1217
        %v1219 = vperm.slane %v1211, %v1218
        %v1220 = vrot.slane %v1215, 4
        %v1221 = vsel %vm1008, %v1220, %v1205
        %v1222 = vrot.slane %v1205, 4
        %v1223 = vsel %vm1008, %v1215, %v1222
        %v1225 = vunpack.c.l.s4 1934713408
        %v1226 = vunpack.c.0.s8 %v1225
        %v1227 = vperm.slane %v1221, %v1226
        %v1229 = vunpack.c.l.s4 1934713408
        %v1230 = vunpack.c.0.s8 %v1229
        %v1231 = vperm.slane %v1223, %v1230
        %v1232 = vrot.slane %v1219, 4
        %v1233 = vsel %vm1008, %v1232, %v1209
        %v1234 = vrot.slane %v1209, 4
        %v1235 = vsel %vm1008, %v1219, %v1234
        %v1237 = vunpack.c.l.s4 1934713408
        %v1238 = vunpack.c.0.s8 %v1237
        %v1239 = vperm.slane %v1233, %v1238
        %v1241 = vunpack.c.l.s4 1934713408
        %v1242 = vunpack.c.0.s8 %v1241
        %v1243 = vperm.slane %v1235, %v1242
        %v1244 = vrot.slane %v1227, 4
        %v1245 = vsel %vm1008, 0.0, %v1244
        %v1246 = vrot.slane %v1231, 4
        %v1247 = vsel %vm1008, 0.0, %v1246
        %v1248 = vrot.slane %v1239, 4
        %v1249 = vsel %vm1008, 0.0, %v1248
        %v1250 = vrot.slane %v1243, 4
        %v1251 = vsel %vm1008, 0.0, %v1250
        %v1252 = vrot.slane %v967, 4
        %v1253 = vsel %vm1008, 0.0, %v1252
        %v1255 = vunpack.c.l.s4 1983009808
        %v1256 = vunpack.c.0.s8 %v1255
        %v1257 = vperm.slane %v967, %v1256
        %v1259 = vunpack.c.l.s4 1983009808
        %v1260 = vunpack.c.0.s8 %v1259
        %v1261 = vperm.slane %v1253, %v1260
        %v1262 = vrot.slane %v1197, 4
        %v1263 = vsel %vm1008, 0.0, %v1262
        %v1265 = vunpack.c.l.s4 1983009808
        %v1266 = vunpack.c.0.s8 %v1265
        %v1267 = vperm.slane %v1197, %v1266
        %v1269 = vunpack.c.l.s4 1983009808
        %v1270 = vunpack.c.0.s8 %v1269
        %v1271 = vperm.slane %v1263, %v1270
        %v1272 = vrot.slane %v1267, 4
        %v1273 = vsel %vm1008, %v1272, %v1257
        %v1274 = vrot.slane %v1257, 4
        %v1275 = vsel %vm1008, %v1267, %v1274
        %v1277 = vunpack.c.l.s4 1934713408
        %v1278 = vunpack.c.0.s8 %v1277
        %v1279 = vperm.slane %v1273, %v1278
        %v1281 = vunpack.c.l.s4 1934713408
        %v1282 = vunpack.c.0.s8 %v1281
        %v1283 = vperm.slane %v1275, %v1282
        %v1284 = vrot.slane %v1271, 4
        %v1285 = vsel %vm1008, %v1284, %v1261
        %v1286 = vrot.slane %v1261, 4
        %v1287 = vsel %vm1008, %v1271, %v1286
        %v1289 = vunpack.c.l.s4 1934713408
        %v1290 = vunpack.c.0.s8 %v1289
        %v1291 = vperm.slane %v1285, %v1290
        %v1293 = vunpack.c.l.s4 1934713408
        %v1294 = vunpack.c.0.s8 %v1293
        %v1295 = vperm.slane %v1287, %v1294
        %v1296 = vrot.slane %v1279, 4
        %v1297 = vsel %vm1008, 0.0, %v1296
        %v1298 = vrot.slane %v1283, 4
        %v1299 = vsel %vm1008, 0.0, %v1298
        %v1300 = vrot.slane %v1291, 4
        %v1301 = vsel %vm1008, 0.0, %v1300
        %v1302 = vrot.slane %v1295, 4
        %v1303 = vsel %vm1008, 0.0, %v1302
        %v1304 = vsel %vm1008, %v1246, %v1227
        %v1306 = vunpack.c.l.s4 1983009808
        %v1307 = vunpack.c.0.s8 %v1306
        %v1308 = vperm.slane %v1304, %v1307
        %v1309 = vrot.slane %v1247, 4
        %v1310 = vsel %vm1008, %v1309, %v1245
        %v1312 = vunpack.c.l.s4 1983009808
        %v1313 = vunpack.c.0.s8 %v1312
        %v1314 = vperm.slane %v1310, %v1313
        %v1315 = vsel %vm1008, %v1250, %v1239
        %v1317 = vunpack.c.l.s4 1983009808
        %v1318 = vunpack.c.0.s8 %v1317
        %v1319 = vperm.slane %v1315, %v1318
        %v1320 = vrot.slane %v1251, 4
        %v1321 = vsel %vm1008, %v1320, %v1249
        %v1323 = vunpack.c.l.s4 1983009808
        %v1324 = vunpack.c.0.s8 %v1323
        %v1325 = vperm.slane %v1321, %v1324
        %v1326 = vrot.slane %v1314, 4
        %v1327 = vsel %vm1008, %v1326, %v1308
        %v1329 = vunpack.c.l.s4 1934713408
        %v1330 = vunpack.c.0.s8 %v1329
        %v1331 = vperm.slane %v1327, %v1330
        %v1332 = vrot.slane %v1325, 4
        %v1333 = vsel %vm1008, %v1332, %v1319
        %v1335 = vunpack.c.l.s4 1934713408
        %v1336 = vunpack.c.0.s8 %v1335
        %v1337 = vperm.slane %v1333, %v1336
        %v1338 = vrot.slane %v1337, 4
        %v1339 = vsel %vm1008, %v1338, %v1331
        %v1340 = vrot.slane %v1331, 4
        %v1341 = vsel %vm1008, %v1337, %v1340
        %v1342 = vsel %vm1008, %v1298, %v1279
        %v1344 = vunpack.c.l.s4 1983009808
        %v1345 = vunpack.c.0.s8 %v1344
        %v1346 = vperm.slane %v1342, %v1345
        %v1347 = vrot.slane %v1299, 4
        %v1348 = vsel %vm1008, %v1347, %v1297
        %v1350 = vunpack.c.l.s4 1983009808
        %v1351 = vunpack.c.0.s8 %v1350
        %v1352 = vperm.slane %v1348, %v1351
        %v1353 = vsel %vm1008, %v1302, %v1291
        %v1355 = vunpack.c.l.s4 1983009808
        %v1356 = vunpack.c.0.s8 %v1355
        %v1357 = vperm.slane %v1353, %v1356
        %v1358 = vrot.slane %v1303, 4
        %v1359 = vsel %vm1008, %v1358, %v1301
        %v1361 = vunpack.c.l.s4 1983009808
        %v1362 = vunpack.c.0.s8 %v1361
        %v1363 = vperm.slane %v1359, %v1362
        %v1364 = vrot.slane %v1352, 4
        %v1365 = vsel %vm1008, %v1364, %v1346
        %v1367 = vunpack.c.l.s4 1934713408
        %v1368 = vunpack.c.0.s8 %v1367
        %v1369 = vperm.slane %v1365, %v1368
        %v1370 = vrot.slane %v1363, 4
        %v1371 = vsel %vm1008, %v1370, %v1357
        %v1373 = vunpack.c.l.s4 1934713408
        %v1374 = vunpack.c.0.s8 %v1373
        %v1375 = vperm.slane %v1371, %v1374
        %v1376 = vrot.slane %v1375, 4
        %v1377 = vsel %vm1008, %v1376, %v1369
        %v1378 = vrot.slane %v1369, 4
        %v1379 = vsel %vm1008, %v1375, %v1378
        %v1380 = vpack.c.bf16 %v1339, %v1339
        %v1381 = vpack.c.bf16 %v1341, %v1341
        %v1382 = vpack.c.bf16 %v1377, %v1377
        %v1383 = vpack.c.bf16 %v1379, %v1379
        %1386 = vrot.lane.b32.xlu0 %v995, 112
        %v1387 = vpop.permute.xlu0 %1386
        %1388 = vrot.lane.b32.xlu0 %v997, 112
        %v1389 = vpop.permute.xlu0 %1388
        %v1392 = vrot.slane %v995, 4
        %v1393 = vsel %vm1008, 0.0, %v1392
        %v1395 = vunpack.c.l.s4 1983009808
        %v1396 = vunpack.c.0.s8 %v1395
        %v1397 = vperm.slane %v995, %v1396
        %v1399 = vunpack.c.l.s4 1983009808
        %v1400 = vunpack.c.0.s8 %v1399
        %v1401 = vperm.slane %v1393, %v1400
        %v1402 = vrot.slane %v1387, 4
        %v1403 = vsel %vm1008, 0.0, %v1402
        %v1405 = vunpack.c.l.s4 1983009808
        %v1406 = vunpack.c.0.s8 %v1405
        %v1407 = vperm.slane %v1387, %v1406
        %v1409 = vunpack.c.l.s4 1983009808
        %v1410 = vunpack.c.0.s8 %v1409
        %v1411 = vperm.slane %v1403, %v1410
        %v1412 = vrot.slane %v1407, 4
        %v1413 = vsel %vm1008, %v1412, %v1397
        %v1414 = vrot.slane %v1397, 4
        %v1415 = vsel %vm1008, %v1407, %v1414
        %v1417 = vunpack.c.l.s4 1934713408
        %v1418 = vunpack.c.0.s8 %v1417
        %v1419 = vperm.slane %v1413, %v1418
        %v1421 = vunpack.c.l.s4 1934713408
        %v1422 = vunpack.c.0.s8 %v1421
        %v1423 = vperm.slane %v1415, %v1422
        %v1424 = vrot.slane %v1411, 4
        %v1425 = vsel %vm1008, %v1424, %v1401
        %v1426 = vrot.slane %v1401, 4
        %v1427 = vsel %vm1008, %v1411, %v1426
        %v1429 = vunpack.c.l.s4 1934713408
        %v1430 = vunpack.c.0.s8 %v1429
        %v1431 = vperm.slane %v1425, %v1430
        %v1433 = vunpack.c.l.s4 1934713408
        %v1434 = vunpack.c.0.s8 %v1433
        %v1435 = vperm.slane %v1427, %v1434
        %v1436 = vrot.slane %v1419, 4
        %v1437 = vsel %vm1008, 0.0, %v1436
        %v1438 = vrot.slane %v1423, 4
        %v1439 = vsel %vm1008, 0.0, %v1438
        %v1440 = vrot.slane %v1431, 4
        %v1441 = vsel %vm1008, 0.0, %v1440
        %v1442 = vrot.slane %v1435, 4
        %v1443 = vsel %vm1008, 0.0, %v1442
        %v1444 = vrot.slane %v997, 4
        %v1445 = vsel %vm1008, 0.0, %v1444
        %v1447 = vunpack.c.l.s4 1983009808
        %v1448 = vunpack.c.0.s8 %v1447
        %v1449 = vperm.slane %v997, %v1448
        %v1451 = vunpack.c.l.s4 1983009808
        %v1452 = vunpack.c.0.s8 %v1451
        %v1453 = vperm.slane %v1445, %v1452
        %v1454 = vrot.slane %v1389, 4
        %v1455 = vsel %vm1008, 0.0, %v1454
        %v1457 = vunpack.c.l.s4 1983009808
        %v1458 = vunpack.c.0.s8 %v1457
        %v1459 = vperm.slane %v1389, %v1458
        %v1461 = vunpack.c.l.s4 1983009808
        %v1462 = vunpack.c.0.s8 %v1461
        %v1463 = vperm.slane %v1455, %v1462
        %v1464 = vrot.slane %v1459, 4
        %v1465 = vsel %vm1008, %v1464, %v1449
        %v1466 = vrot.slane %v1449, 4
        %v1467 = vsel %vm1008, %v1459, %v1466
        %v1469 = vunpack.c.l.s4 1934713408
        %v1470 = vunpack.c.0.s8 %v1469
        %v1471 = vperm.slane %v1465, %v1470
        %v1473 = vunpack.c.l.s4 1934713408
        %v1474 = vunpack.c.0.s8 %v1473
        %v1475 = vperm.slane %v1467, %v1474
        %v1476 = vrot.slane %v1463, 4
        %v1477 = vsel %vm1008, %v1476, %v1453
        %v1478 = vrot.slane %v1453, 4
        %v1479 = vsel %vm1008, %v1463, %v1478
        %v1481 = vunpack.c.l.s4 1934713408
        %v1482 = vunpack.c.0.s8 %v1481
        %v1483 = vperm.slane %v1477, %v1482
        %v1485 = vunpack.c.l.s4 1934713408
        %v1486 = vunpack.c.0.s8 %v1485
        %v1487 = vperm.slane %v1479, %v1486
        %v1488 = vrot.slane %v1471, 4
        %v1489 = vsel %vm1008, 0.0, %v1488
        %v1490 = vrot.slane %v1475, 4
        %v1491 = vsel %vm1008, 0.0, %v1490
        %v1492 = vrot.slane %v1483, 4
        %v1493 = vsel %vm1008, 0.0, %v1492
        %v1494 = vrot.slane %v1487, 4
        %v1495 = vsel %vm1008, 0.0, %v1494
        %v1496 = vsel %vm1008, %v1438, %v1419
        %v1498 = vunpack.c.l.s4 1983009808
        %v1499 = vunpack.c.0.s8 %v1498
        %v1500 = vperm.slane %v1496, %v1499
        %v1501 = vrot.slane %v1439, 4
        %v1502 = vsel %vm1008, %v1501, %v1437
        %v1504 = vunpack.c.l.s4 1983009808
        %v1505 = vunpack.c.0.s8 %v1504
        %v1506 = vperm.slane %v1502, %v1505
        %v1507 = vsel %vm1008, %v1442, %v1431
        %v1509 = vunpack.c.l.s4 1983009808
        %v1510 = vunpack.c.0.s8 %v1509
        %v1511 = vperm.slane %v1507, %v1510
        %v1512 = vrot.slane %v1443, 4
        %v1513 = vsel %vm1008, %v1512, %v1441
        %v1515 = vunpack.c.l.s4 1983009808
        %v1516 = vunpack.c.0.s8 %v1515
        %v1517 = vperm.slane %v1513, %v1516
        %v1518 = vrot.slane %v1506, 4
        %v1519 = vsel %vm1008, %v1518, %v1500
        %v1521 = vunpack.c.l.s4 1934713408
        %v1522 = vunpack.c.0.s8 %v1521
        %v1523 = vperm.slane %v1519, %v1522
        %v1524 = vrot.slane %v1517, 4
        %v1525 = vsel %vm1008, %v1524, %v1511
        %v1527 = vunpack.c.l.s4 1934713408
        %v1528 = vunpack.c.0.s8 %v1527
        %v1529 = vperm.slane %v1525, %v1528
        %v1530 = vrot.slane %v1529, 4
        %v1531 = vsel %vm1008, %v1530, %v1523
        %v1532 = vrot.slane %v1523, 4
        %v1533 = vsel %vm1008, %v1529, %v1532
        %v1534 = vsel %vm1008, %v1490, %v1471
        %v1536 = vunpack.c.l.s4 1983009808
        %v1537 = vunpack.c.0.s8 %v1536
        %v1538 = vperm.slane %v1534, %v1537
        %v1539 = vrot.slane %v1491, 4
        %v1540 = vsel %vm1008, %v1539, %v1489
        %v1542 = vunpack.c.l.s4 1983009808
        %v1543 = vunpack.c.0.s8 %v1542
        %v1544 = vperm.slane %v1540, %v1543
        %v1545 = vsel %vm1008, %v1494, %v1483
        %v1547 = vunpack.c.l.s4 1983009808
        %v1548 = vunpack.c.0.s8 %v1547
        %v1549 = vperm.slane %v1545, %v1548
        %v1550 = vrot.slane %v1495, 4
        %v1551 = vsel %vm1008, %v1550, %v1493
        %v1553 = vunpack.c.l.s4 1983009808
        %v1554 = vunpack.c.0.s8 %v1553
        %v1555 = vperm.slane %v1551, %v1554
        %v1556 = vrot.slane %v1544, 4
        %v1557 = vsel %vm1008, %v1556, %v1538
        %v1559 = vunpack.c.l.s4 1934713408
        %v1560 = vunpack.c.0.s8 %v1559
        %v1561 = vperm.slane %v1557, %v1560
        %v1562 = vrot.slane %v1555, 4
        %v1563 = vsel %vm1008, %v1562, %v1549
        %v1565 = vunpack.c.l.s4 1934713408
        %v1566 = vunpack.c.0.s8 %v1565
        %v1567 = vperm.slane %v1563, %v1566
        %v1568 = vrot.slane %v1567, 4
        %v1569 = vsel %vm1008, %v1568, %v1561
        %v1570 = vrot.slane %v1561, 4
        %v1571 = vsel %vm1008, %v1567, %v1570
        %v1572 = vpack.c.bf16 %v1531, %v1531
        %v1573 = vpack.c.bf16 %v1533, %v1533
        %v1574 = vpack.c.bf16 %v1569, %v1569
        %v1575 = vpack.c.bf16 %v1571, %v1571
        %vm1576 = vcmask 130048
        %v1578 = vsel %vm1576, %v1188, 0
        %v1581 = vsel %vm1576, %v1380, 0
        %1583 = vmatpush.bf16.xpose.msra.mxu0 0
        %1584 = vmatpush.bf16.xpose.msra.mxu0 0
        %1585 = vmatpush.bf16.xpose.msra.mxu0 0
        %1586 = vmatpush.bf16.xpose.msra.mxu0 0
        %1587 = vmatpush.bf16.xpose.msra.mxu0 0
        %1588 = vmatpush.bf16.xpose.msra.mxu0 0
        %1589 = vmatpush.bf16.xpose.msra.mxu0 0
        %1590 = vmatpush.bf16.xpose.msra.mxu0 %v1581
        %1591 = vmatmul.bf16.gmra.mxu0 %v1578
        %v1592 = vpop.f32.mrf.mxu0
        %v1593 = vadd.f32 0.0, %v1592
        %v1594 = vpop.f32.mrf.mxu0
        %1595 = vdwg.mxu0
        %v1597 = vsel %vm1576, %v1189, 0
        %v1600 = vsel %vm1576, %v1381, 0
        %1602 = vmatpush.bf16.xpose.msra.mxu0 0
        %1603 = vmatpush.bf16.xpose.msra.mxu0 0
        %1604 = vmatpush.bf16.xpose.msra.mxu0 0
        %1605 = vmatpush.bf16.xpose.msra.mxu0 0
        %1606 = vmatpush.bf16.xpose.msra.mxu0 0
        %1607 = vmatpush.bf16.xpose.msra.mxu0 0
        %1608 = vmatpush.bf16.xpose.msra.mxu0 0
        %1609 = vmatpush.bf16.xpose.msra.mxu0 %v1600
        %1610 = vmatmul.bf16.gmra.mxu0 %v1597
        %v1611 = vpop.f32.mrf.mxu0
        %v1612 = vadd.f32 0.0, %v1611
        %v1613 = vpop.f32.mrf.mxu0
        %1614 = vdwg.mxu0
        %v1616 = vsel %vm1576, %v1190, 0
        %v1619 = vsel %vm1576, %v1382, 0
        %1621 = vmatpush.bf16.xpose.msra.mxu0 0
        %1622 = vmatpush.bf16.xpose.msra.mxu0 0
        %1623 = vmatpush.bf16.xpose.msra.mxu0 0
        %1624 = vmatpush.bf16.xpose.msra.mxu0 0
        %1625 = vmatpush.bf16.xpose.msra.mxu0 0
        %1626 = vmatpush.bf16.xpose.msra.mxu0 0
        %1627 = vmatpush.bf16.xpose.msra.mxu0 0
        %1628 = vmatpush.bf16.xpose.msra.mxu0 %v1619
        %1629 = vmatmul.bf16.gmra.mxu0 %v1616
        %v1630 = vpop.f32.mrf.mxu0
        %v1631 = vadd.f32 0.0, %v1630
        %v1632 = vpop.f32.mrf.mxu0
        %1633 = vdwg.mxu0
        %v1635 = vsel %vm1576, %v1191, 0
        %v1638 = vsel %vm1576, %v1383, 0
        %1640 = vmatpush.bf16.xpose.msra.mxu0 0
        %1641 = vmatpush.bf16.xpose.msra.mxu0 0
        %1642 = vmatpush.bf16.xpose.msra.mxu0 0
        %1643 = vmatpush.bf16.xpose.msra.mxu0 0
        %1644 = vmatpush.bf16.xpose.msra.mxu0 0
        %1645 = vmatpush.bf16.xpose.msra.mxu0 0
        %1646 = vmatpush.bf16.xpose.msra.mxu0 0
        %1647 = vmatpush.bf16.xpose.msra.mxu0 %v1638
        %1648 = vmatmul.bf16.gmra.mxu0 %v1635
        %v1649 = vpop.f32.mrf.mxu0
        %v1650 = vadd.f32 0.0, %v1649
        %v1651 = vpop.f32.mrf.mxu0
        %1652 = vdwg.mxu0
        %vm1653 = vcmask 64512
        %v1654 = vsel %vm1653, %v1593, -inf
        %1655 = vmax.xlane.f32.xlu0 %v1654
        %v1656 = vpop.xlane.xlu0 %1655
        %v1657 = vsel %vm1653, %v1612, -inf
        %1658 = vmax.xlane.f32.xlu0 %v1657
        %v1659 = vpop.xlane.xlu0 %1658
        %v1660 = vsel %vm1653, %v1631, -inf
        %1661 = vmax.xlane.f32.xlu0 %v1660
        %v1662 = vpop.xlane.xlu0 %1661
        %v1663 = vsel %vm1653, %v1650, -inf
        %1664 = vmax.xlane.f32.xlu0 %v1663
        %v1665 = vpop.xlane.xlu0 %1664
        %v1666 = vsub.f32 %v1593, %v1656
        %v1667 = vsub.f32 %v1612, %v1659
        %v1668 = vsub.f32 %v1631, %v1662
        %v1669 = vsub.f32 %v1650, %v1665
        %v1670 = vmul.f32 %v1666, 1.442695
        %v1671 = vpow.pop %v1670
        %v1672 = vmul.f32 %v1667, 1.442695
        %v1673 = vpow.pop %v1672
        %v1674 = vmul.f32 %v1668, 1.442695
        %v1675 = vpow.pop %v1674
        %v1676 = vmul.f32 %v1669, 1.442695
        %v1677 = vpow.pop %v1676
        %v1678 = vsel %vm1653, %v1671, 0.0
        %1679 = vadd.xlane.f32.xlu0 %v1678
        %v1680 = vpop.xlane.xlu0 %1679
        %v1681 = vsel %vm1653, %v1673, 0.0
        %1682 = vadd.xlane.f32.xlu0 %v1681
        %v1683 = vpop.xlane.xlu0 %1682
        %v1684 = vsel %vm1653, %v1675, 0.0
        %1685 = vadd.xlane.f32.xlu0 %v1684
        %v1686 = vpop.xlane.xlu0 %1685
        %v1687 = vsel %vm1653, %v1677, 0.0
        %1688 = vadd.xlane.f32.xlu0 %v1687
        %v1689 = vpop.xlane.xlu0 %1688
        %v1690 = vrcp.pop %v1680
        %v1691 = vrcp.pop %v1683
        %v1692 = vrcp.pop %v1686
        %v1693 = vrcp.pop %v1689
        %v1694 = vmul.f32 %v1671, %v1690
        %v1695 = vmul.f32 %v1673, %v1691
        %v1696 = vmul.f32 %v1675, %v1692
        %v1697 = vmul.f32 %v1677, %v1693
        %v1698 = vpack.c.bf16 %v1694, %v1694
        %v1699 = vpack.c.bf16 %v1695, %v1695
        %v1700 = vpack.c.bf16 %v1696, %v1696
        %v1701 = vpack.c.bf16 %v1697, %v1697
        %v1703 = vsel %vm1653, %v1698, 0
        %vm1705 = vcmask 1043456
        %v1707 = vsel %vm1705, %v1572, 0
        %1709 = vmatpush.bf16.msra.mxu0 0
        %1710 = vmatpush.bf16.msra.mxu0 0
        %1711 = vmatpush.bf16.msra.mxu0 0
        %1712 = vmatpush.bf16.msra.mxu0 0
        %1713 = vmatpush.bf16.msra.mxu0 0
        %1714 = vmatpush.bf16.msra.mxu0 0
        %1715 = vmatpush.bf16.msra.mxu0 0
        %1716 = vmatpush.bf16.msra.mxu0 %v1707
        %1717 = vmatmul.bf16.gmra.mxu0 %v1703
        %v1718 = vpop.f32.mrf.mxu0
        %v1719 = vadd.f32 0.0, %v1718
        %v1720 = vpop.f32.mrf.mxu0
        %1721 = vdwg.mxu0
        %v1723 = vsel %vm1653, %v1699, 0
        %v1726 = vsel %vm1705, %v1573, 0
        %1728 = vmatpush.bf16.msra.mxu0 0
        %1729 = vmatpush.bf16.msra.mxu0 0
        %1730 = vmatpush.bf16.msra.mxu0 0
        %1731 = vmatpush.bf16.msra.mxu0 0
        %1732 = vmatpush.bf16.msra.mxu0 0
        %1733 = vmatpush.bf16.msra.mxu0 0
        %1734 = vmatpush.bf16.msra.mxu0 0
        %1735 = vmatpush.bf16.msra.mxu0 %v1726
        %1736 = vmatmul.bf16.gmra.mxu0 %v1723
        %v1737 = vpop.f32.mrf.mxu0
        %v1738 = vadd.f32 0.0, %v1737
        %v1739 = vpop.f32.mrf.mxu0
        %1740 = vdwg.mxu0
        %v1742 = vsel %vm1653, %v1700, 0
        %v1745 = vsel %vm1705, %v1574, 0
        %1747 = vmatpush.bf16.msra.mxu0 0
        %1748 = vmatpush.bf16.msra.mxu0 0
        %1749 = vmatpush.bf16.msra.mxu0 0
        %1750 = vmatpush.bf16.msra.mxu0 0
        %1751 = vmatpush.bf16.msra.mxu0 0
        %1752 = vmatpush.bf16.msra.mxu0 0
        %1753 = vmatpush.bf16.msra.mxu0 0
        %1754 = vmatpush.bf16.msra.mxu0 %v1745
        %1755 = vmatmul.bf16.gmra.mxu0 %v1742
        %v1756 = vpop.f32.mrf.mxu0
        %v1757 = vadd.f32 0.0, %v1756
        %v1758 = vpop.f32.mrf.mxu0
        %1759 = vdwg.mxu0
        %v1761 = vsel %vm1653, %v1701, 0
        %v1764 = vsel %vm1705, %v1575, 0
        %1766 = vmatpush.bf16.msra.mxu0 0
        %1767 = vmatpush.bf16.msra.mxu0 0
        %1768 = vmatpush.bf16.msra.mxu0 0
        %1769 = vmatpush.bf16.msra.mxu0 0
        %1770 = vmatpush.bf16.msra.mxu0 0
        %1771 = vmatpush.bf16.msra.mxu0 0
        %1772 = vmatpush.bf16.msra.mxu0 0
        %1773 = vmatpush.bf16.msra.mxu0 %v1764
        %1774 = vmatmul.bf16.gmra.mxu0 %v1761
        %v1775 = vpop.f32.mrf.mxu0
        %v1776 = vadd.f32 0.0, %v1775
        %v1777 = vpop.f32.mrf.mxu0
        %1778 = vdwg.mxu0
        %v1779 = vrot.slane %v1719, 4
        %v1780 = vsel %vm1008, 0.0, %v1779
        %v1782 = vunpack.c.l.s4 1983009808
        %v1783 = vunpack.c.0.s8 %v1782
        %v1784 = vperm.slane %v1719, %v1783
        %v1786 = vunpack.c.l.s4 1983009808
        %v1787 = vunpack.c.0.s8 %v1786
        %v1788 = vperm.slane %v1780, %v1787
        %v1789 = vrot.slane %v1738, 4
        %v1790 = vsel %vm1008, 0.0, %v1789
        %v1792 = vunpack.c.l.s4 1983009808
        %v1793 = vunpack.c.0.s8 %v1792
        %v1794 = vperm.slane %v1738, %v1793
        %v1796 = vunpack.c.l.s4 1983009808
        %v1797 = vunpack.c.0.s8 %v1796
        %v1798 = vperm.slane %v1790, %v1797
        %v1799 = vrot.slane %v1794, 4
        %v1800 = vsel %vm1008, %v1799, %v1784
        %v1801 = vrot.slane %v1784, 4
        %v1802 = vsel %vm1008, %v1794, %v1801
        %v1804 = vunpack.c.l.s4 1934713408
        %v1805 = vunpack.c.0.s8 %v1804
        %v1806 = vperm.slane %v1800, %v1805
        %v1808 = vunpack.c.l.s4 1934713408
        %v1809 = vunpack.c.0.s8 %v1808
        %v1810 = vperm.slane %v1802, %v1809
        %v1811 = vrot.slane %v1798, 4
        %v1812 = vsel %vm1008, %v1811, %v1788
        %v1813 = vrot.slane %v1788, 4
        %v1814 = vsel %vm1008, %v1798, %v1813
        %v1816 = vunpack.c.l.s4 1934713408
        %v1817 = vunpack.c.0.s8 %v1816
        %v1818 = vperm.slane %v1812, %v1817
        %v1820 = vunpack.c.l.s4 1934713408
        %v1821 = vunpack.c.0.s8 %v1820
        %v1822 = vperm.slane %v1814, %v1821
        %v1823 = vrot.slane %v1806, 4
        %v1824 = vsel %vm1008, 0.0, %v1823
        %v1825 = vrot.slane %v1810, 4
        %v1826 = vsel %vm1008, 0.0, %v1825
        %v1827 = vrot.slane %v1818, 4
        %v1828 = vsel %vm1008, 0.0, %v1827
        %v1829 = vrot.slane %v1822, 4
        %v1830 = vsel %vm1008, 0.0, %v1829
        %v1831 = vrot.slane %v1757, 4
        %v1832 = vsel %vm1008, 0.0, %v1831
        %v1834 = vunpack.c.l.s4 1983009808
        %v1835 = vunpack.c.0.s8 %v1834
        %v1836 = vperm.slane %v1757, %v1835
        %v1838 = vunpack.c.l.s4 1983009808
        %v1839 = vunpack.c.0.s8 %v1838
        %v1840 = vperm.slane %v1832, %v1839
        %v1841 = vrot.slane %v1776, 4
        %v1842 = vsel %vm1008, 0.0, %v1841
        %v1844 = vunpack.c.l.s4 1983009808
        %v1845 = vunpack.c.0.s8 %v1844
        %v1846 = vperm.slane %v1776, %v1845
        %v1848 = vunpack.c.l.s4 1983009808
        %v1849 = vunpack.c.0.s8 %v1848
        %v1850 = vperm.slane %v1842, %v1849
        %v1851 = vrot.slane %v1846, 4
        %v1852 = vsel %vm1008, %v1851, %v1836
        %v1853 = vrot.slane %v1836, 4
        %v1854 = vsel %vm1008, %v1846, %v1853
        %v1856 = vunpack.c.l.s4 1934713408
        %v1857 = vunpack.c.0.s8 %v1856
        %v1858 = vperm.slane %v1852, %v1857
        %v1860 = vunpack.c.l.s4 1934713408
        %v1861 = vunpack.c.0.s8 %v1860
        %v1862 = vperm.slane %v1854, %v1861
        %v1863 = vrot.slane %v1850, 4
        %v1864 = vsel %vm1008, %v1863, %v1840
        %v1865 = vrot.slane %v1840, 4
        %v1866 = vsel %vm1008, %v1850, %v1865
        %v1868 = vunpack.c.l.s4 1934713408
        %v1869 = vunpack.c.0.s8 %v1868
        %v1870 = vperm.slane %v1864, %v1869
        %v1872 = vunpack.c.l.s4 1934713408
        %v1873 = vunpack.c.0.s8 %v1872
        %v1874 = vperm.slane %v1866, %v1873
        %v1875 = vrot.slane %v1858, 4
        %v1876 = vsel %vm1008, 0.0, %v1875
        %v1877 = vrot.slane %v1862, 4
        %v1878 = vsel %vm1008, 0.0, %v1877
        %v1879 = vrot.slane %v1870, 4
        %v1880 = vsel %vm1008, 0.0, %v1879
        %v1881 = vrot.slane %v1874, 4
        %v1882 = vsel %vm1008, 0.0, %v1881
        %v1883 = vsel %vm1008, %v1825, %v1806
        %v1885 = vunpack.c.l.s4 1983009808
        %v1886 = vunpack.c.0.s8 %v1885
        %v1887 = vperm.slane %v1883, %v1886
        %v1888 = vrot.slane %v1826, 4
        %v1889 = vsel %vm1008, %v1888, %v1824
        %v1891 = vunpack.c.l.s4 1983009808
        %v1892 = vunpack.c.0.s8 %v1891
        %v1893 = vperm.slane %v1889, %v1892
        %v1894 = vsel %vm1008, %v1829, %v1818
        %v1896 = vunpack.c.l.s4 1983009808
        %v1897 = vunpack.c.0.s8 %v1896
        %v1898 = vperm.slane %v1894, %v1897
        %v1899 = vrot.slane %v1830, 4
        %v1900 = vsel %vm1008, %v1899, %v1828
        %v1902 = vunpack.c.l.s4 1983009808
        %v1903 = vunpack.c.0.s8 %v1902
        %v1904 = vperm.slane %v1900, %v1903
        %v1905 = vrot.slane %v1893, 4
        %v1906 = vsel %vm1008, %v1905, %v1887
        %v1908 = vunpack.c.l.s4 1934713408
        %v1909 = vunpack.c.0.s8 %v1908
        %v1910 = vperm.slane %v1906, %v1909
        %v1911 = vrot.slane %v1904, 4
        %v1912 = vsel %vm1008, %v1911, %v1898
        %v1914 = vunpack.c.l.s4 1934713408
        %v1915 = vunpack.c.0.s8 %v1914
        %v1916 = vperm.slane %v1912, %v1915
        %v1917 = vrot.slane %v1916, 4
        %v1918 = vsel %vm1008, %v1917, %v1910
        %v1919 = vrot.slane %v1910, 4
        %v1920 = vsel %vm1008, %v1916, %v1919
        %v1921 = vsel %vm1008, %v1877, %v1858
        %v1923 = vunpack.c.l.s4 1983009808
        %v1924 = vunpack.c.0.s8 %v1923
        %v1925 = vperm.slane %v1921, %v1924
        %v1926 = vrot.slane %v1878, 4
        %v1927 = vsel %vm1008, %v1926, %v1876
        %v1929 = vunpack.c.l.s4 1983009808
        %v1930 = vunpack.c.0.s8 %v1929
        %v1931 = vperm.slane %v1927, %v1930
        %v1932 = vsel %vm1008, %v1881, %v1870
        %v1934 = vunpack.c.l.s4 1983009808
        %v1935 = vunpack.c.0.s8 %v1934
        %v1936 = vperm.slane %v1932, %v1935
        %v1937 = vrot.slane %v1882, 4
        %v1938 = vsel %vm1008, %v1937, %v1880
        %v1940 = vunpack.c.l.s4 1983009808
        %v1941 = vunpack.c.0.s8 %v1940
        %v1942 = vperm.slane %v1938, %v1941
        %v1943 = vrot.slane %v1931, 4
        %v1944 = vsel %vm1008, %v1943, %v1925
        %v1946 = vunpack.c.l.s4 1934713408
        %v1947 = vunpack.c.0.s8 %v1946
        %v1948 = vperm.slane %v1944, %v1947
        %v1949 = vrot.slane %v1942, 4
        %v1950 = vsel %vm1008, %v1949, %v1936
        %v1952 = vunpack.c.l.s4 1934713408
        %v1953 = vunpack.c.0.s8 %v1952
        %v1954 = vperm.slane %v1950, %v1953
        %v1955 = vrot.slane %v1954, 4
        %v1956 = vsel %vm1008, %v1955, %v1948
        %v1957 = vrot.slane %v1948, 4
        %v1958 = vsel %vm1008, %v1954, %v1957
        %1961 = vrot.lane.b32.xlu0 %v1920, 16
        %v1962 = vpop.permute.xlu0 %1961
        %1963 = vrot.lane.b32.xlu0 %v1958, 16
        %v1964 = vpop.permute.xlu0 %1963
        %v1967 = vsel %vm1576, %v1918, %v1962
        %v1968 = vsel %vm1576, %v1956, %v1964
        %v1969 = vpack.c.bf16 %v1968, %v1967
        %v1970 = vld [vmem:[%s807] sm:$0xf]
        %v1971 = vld [vmem:[%s807 + $0x4] sm:$0xf]
        %v1972 = vld [vmem:[%s807 + $0x8] sm:$0xf]
        %v1973 = vld [vmem:[%s807 + $0xc] sm:$0xf]
        %v1978 = vunpack.c.l.b16 %v1970
        %v1979 = vunpack.c.l.b16 %v1971
        %v1980 = vunpack.c.l.b16 %v1972
        %v1981 = vunpack.c.l.b16 %v1973
        %v1982 = vpack.c.b16 %v1979, %v1978
        %v1983 = vpack.c.b16 %v1981, %v1980
        %v1987 = vsel %vm843, %v1969, 0
        %1989 = vmatpush.bf16.msra.mxu0 0
        %1990 = vmatpush.bf16.msra.mxu0 0
        %1991 = vmatpush.bf16.msra.mxu0 0
        %1992 = vmatpush.bf16.msra.mxu0 0
        %1993 = vmatpush.bf16.msra.mxu0 0
        %1994 = vmatpush.bf16.msra.mxu0 0
        %1995 = vmatpush.bf16.msra.mxu0 %v1983
        %1996 = vmatpush.bf16.msra.mxu0 %v1982
        %1997 = vmatmul.bf16.gmra.mxu0 %v1987
        %v1998 = vpop.f32.mrf.mxu0
        %v1999 = vadd.f32 0.0, %v1998
        %v2000 = vpop.f32.mrf.mxu0
        %v2001 = vadd.f32 0.0, %v2000
        %2002 = vdwg.mxu0
        %v2003 = vadd.f32 %v839, %v1999
        %v2004 = vadd.f32 %v840, %v2001
        %v2005 = vld [vmem:[%s810] sm:$0x1]
        %v2006 = vld [vmem:[%s813] sm:$0x1]
        %v2007 = vsel %vm843, %v2003, 0.0
        %2008 = vadd.xlane.f32.xlu0 %v2007
        %v2009 = vpop.xlane.xlu0 %2008
        %v2010 = vsel %vm843, %v2004, 0.0
        %2011 = vadd.xlane.f32.xlu0 %v2010
        %v2012 = vpop.xlane.xlu0 %2011
        %v2013 = vmul.f32 %v2009, %v856
        %v2014 = vmul.f32 %v2012, %v856
        %v2015 = vsub.f32 %v2003, %v2013
        %v2016 = vsub.f32 %v2004, %v2014
        %v2017 = vmul.f32 %v2015, %v2015
        %v2018 = vmul.f32 %v2016, %v2016
        %v2019 = vsel %vm843, %v2017, 0.0
        %2020 = vadd.xlane.f32.xlu0 %v2019
        %v2021 = vpop.xlane.xlu0 %2020
        %v2022 = vsel %vm843, %v2018, 0.0
        %2023 = vadd.xlane.f32.xlu0 %v2022
        %v2024 = vpop.xlane.xlu0 %2023
        %v2025 = vmul.f32 %v2021, %v856
        %v2026 = vmul.f32 %v2024, %v856
        %v2027 = vadd.f32 %v2025, 1e-05
        %v2028 = vadd.f32 %v2026, 1e-05
        %v2029 = vrsqrt.pop %v2027
        %v2030 = vmul.f32 %v2029, %v2027
        %v2031 = vmul.f32 %v2030, %v2029
        %v2032 = vmul.f32 0.5, %v2031
        %v2033 = vsub.f32 1.5, %v2032
        %v2034 = vmul.f32 %v2029, %v2033
        %vm2035 = vweird.f32 %v2027
        %vm2036 = vweird.f32 %v2029
        %vm2037 = vmor %vm2035, %vm2036
        %v2038 = vsel %vm2037, %v2029, %v2034
        %v2039 = vrsqrt.pop %v2028
        %v2040 = vmul.f32 %v2039, %v2028
        %v2041 = vmul.f32 %v2040, %v2039
        %v2042 = vmul.f32 0.5, %v2041
        %v2043 = vsub.f32 1.5, %v2042
        %v2044 = vmul.f32 %v2039, %v2043
        %vm2045 = vweird.f32 %v2028
        %vm2046 = vweird.f32 %v2039
        %vm2047 = vmor %vm2045, %vm2046
        %v2048 = vsel %vm2047, %v2039, %v2044
        %v2049 = vmul.f32 %v2015, %v2038
        %v2050 = vmul.f32 %v2016, %v2048
        %v2052 = vperm.slane %v2005, 0
        %v2054 = vmul.f32 %v2049, %v2052
        %v2055 = vmul.f32 %v2050, %v2052
        %v2057 = vperm.slane %v2006, 0
        %v2059 = vadd.f32 %v2054, %v2057
        %v2060 = vadd.f32 %v2055, %v2057
        %v2061 = vpack.c.bf16 %v2060, %v2059
        %v2062 = vld [vmem:[%s666] sm:$0xf]
        %v2063 = vld [vmem:[%s666 + $0x4] sm:$0xf]
        %v2064 = vld [vmem:[%s666 + $0x8] sm:$0xf]
        %v2065 = vld [vmem:[%s666 + $0xc] sm:$0xf]
        %v2066 = vld [vmem:[%s816] sm:$0x1]
        %v2068 = vperm.slane %v2066, 0
        %v2074 = vunpack.c.l.b16 %v2062
        %v2075 = vunpack.c.l.b16 %v2063
        %v2076 = vunpack.c.l.b16 %v2064
        %v2077 = vunpack.c.l.b16 %v2065
        %v2078 = vpack.c.b16 %v2075, %v2074
        %v2079 = vpack.c.b16 %v2077, %v2076
        %v2083 = vsel %vm843, %v2061, 0
        %2085 = vmatpush.bf16.msra.mxu0 0
        %2086 = vmatpush.bf16.msra.mxu0 0
        %2087 = vmatpush.bf16.msra.mxu0 0
        %2088 = vmatpush.bf16.msra.mxu0 0
        %2089 = vmatpush.bf16.msra.mxu0 0
        %2090 = vmatpush.bf16.msra.mxu0 0
        %2091 = vmatpush.bf16.msra.mxu0 %v2079
        %2092 = vmatpush.bf16.msra.mxu0 %v2078
        %2093 = vmatmul.bf16.gmra.mxu0 %v2083
        %v2094 = vpop.f32.mrf.mxu0
        %v2095 = vadd.f32 %v2068, %v2094
        %v2096 = vpop.f32.mrf.mxu0
        %v2097 = vadd.f32 %v2068, %v2096
        %2098 = vdwg.mxu0
        %v2099 = vld [vmem:[%s676] sm:$0xf]
        %v2100 = vld [vmem:[%s676 + $0x4] sm:$0xf]
        %v2101 = vld [vmem:[%s676 + $0x8] sm:$0xf]
        %v2102 = vld [vmem:[%s676 + $0xc] sm:$0xf]
        %v2103 = vld [vmem:[%s819] sm:$0x1]
        %v2105 = vperm.slane %v2103, 0
        %v2111 = vunpack.c.l.b16 %v2099
        %v2112 = vunpack.c.l.b16 %v2100
        %v2113 = vunpack.c.l.b16 %v2101
        %v2114 = vunpack.c.l.b16 %v2102
        %v2115 = vpack.c.b16 %v2112, %v2111
        %v2116 = vpack.c.b16 %v2114, %v2113
        %2119 = vmatpush.bf16.msra.mxu0 0
        %2120 = vmatpush.bf16.msra.mxu0 0
        %2121 = vmatpush.bf16.msra.mxu0 0
        %2122 = vmatpush.bf16.msra.mxu0 0
        %2123 = vmatpush.bf16.msra.mxu0 0
        %2124 = vmatpush.bf16.msra.mxu0 0
        %2125 = vmatpush.bf16.msra.mxu0 %v2116
        %2126 = vmatpush.bf16.msra.mxu0 %v2115
        %2127 = vmatmul.bf16.gmra.mxu0 %v2083
        %v2128 = vpop.f32.mrf.mxu0
        %v2129 = vadd.f32 %v2105, %v2128
        %v2130 = vpop.f32.mrf.mxu0
        %v2131 = vadd.f32 %v2105, %v2130
        %2132 = vdwg.mxu0
        %v2133 = vmul.f32 %v2129, 0.5
        %v2134 = vmul.f32 %v2131, 0.5
        %v2135 = vmul.f32 %v2129, 0.70710677
        %v2136 = vmul.f32 %v2131, 0.70710677
        %v2137 = vmul.f32 %v2135, %v2135
        %v2138 = vmin.f32 16.0, %v2137
        %v2139 = vmul.f32 %v2138, 2.1237322e-06
        %v2140 = vadd.f32 %v2139, 0.00028619796
        %v2141 = vmul.f32 %v2138, %v2140
        %v2142 = vadd.f32 %v2141, 0.0036580483
        %v2143 = vmul.f32 %v2138, %v2142
        %v2144 = vadd.f32 %v2143, 0.05243302
        %v2145 = vmul.f32 %v2138, %v2144
        %v2146 = vadd.f32 %v2145, 0.18741608
        %v2147 = vmul.f32 %v2138, %v2146
        %v2148 = vadd.f32 %v2147, 1.1283791
        %v2149 = vmul.f32 %v2135, %v2148
        %v2150 = vmul.f32 %v2138, 3.8918573e-05
        %v2151 = vadd.f32 %v2150, 0.001143296
        %v2152 = vmul.f32 %v2138, %v2151
        %v2153 = vadd.f32 %v2152, 0.014752088
        %v2154 = vmul.f32 %v2138, %v2153
        %v2155 = vadd.f32 %v2154, 0.112945676
        %v2156 = vmul.f32 %v2138, %v2155
        %v2157 = vadd.f32 %v2156, 0.4994258
        %v2158 = vmul.f32 %v2138, %v2157
        %v2159 = vadd.f32 %v2158, 1.0
        %v2160 = vrcp.pop %v2159
        %v2161 = vmul.f32 %v2159, %v2160
        %v2162 = vsub.f32 1.0, %v2161
        %v2163 = vmul.f32 %v2160, %v2162
        %v2164 = vadd.f32 %v2160, %v2163
        %vm2165 = vweird.f32 %v2159
        %vm2166 = vweird.f32 %v2160
        %vm2167 = vmor %vm2165, %vm2166
        %v2168 = vsel %vm2167, %v2160, %v2164
        %v2169 = vand.u32 2147483647, %v2159
        %vm2170 = vcmp.eq.f32.partialorder %v2169, 8.507059e+37
        %v2171 = vand.u32 %v2159, 2147483648
        %v2172 = vor.u32 1.1754944e-38, %v2171
        %v2173 = vsel %vm2170, %v2172, %v2168
        %v2174 = vmul.f32 %v2149, %v2173
        %v2175 = vmin.f32 %v2174, 1.0
        %v2176 = vmax.f32 %v2175, -1.0
        %v2177 = vmul.f32 %v2136, %v2136
        %v2178 = vmin.f32 16.0, %v2177
        %v2179 = vmul.f32 %v2178, 2.1237322e-06
        %v2180 = vadd.f32 %v2179, 0.00028619796
        %v2181 = vmul.f32 %v2178, %v2180
        %v2182 = vadd.f32 %v2181, 0.0036580483
        %v2183 = vmul.f32 %v2178, %v2182
        %v2184 = vadd.f32 %v2183, 0.05243302
        %v2185 = vmul.f32 %v2178, %v2184
        %v2186 = vadd.f32 %v2185, 0.18741608
        %v2187 = vmul.f32 %v2178, %v2186
        %v2188 = vadd.f32 %v2187, 1.1283791
        %v2189 = vmul.f32 %v2136, %v2188
        %v2190 = vmul.f32 %v2178, 3.8918573e-05
        %v2191 = vadd.f32 %v2190, 0.001143296
        %v2192 = vmul.f32 %v2178, %v2191
        %v2193 = vadd.f32 %v2192, 0.014752088
        %v2194 = vmul.f32 %v2178, %v2193
        %v2195 = vadd.f32 %v2194, 0.112945676
        %v2196 = vmul.f32 %v2178, %v2195
        %v2197 = vadd.f32 %v2196, 0.4994258
        %v2198 = vmul.f32 %v2178, %v2197
        %v2199 = vadd.f32 %v2198, 1.0
        %v2200 = vrcp.pop %v2199
        %v2201 = vmul.f32 %v2199, %v2200
        %v2202 = vsub.f32 1.0, %v2201
        %v2203 = vmul.f32 %v2200, %v2202
        %v2204 = vadd.f32 %v2200, %v2203
        %vm2205 = vweird.f32 %v2199
        %vm2206 = vweird.f32 %v2200
        %vm2207 = vmor %vm2205, %vm2206
        %v2208 = vsel %vm2207, %v2200, %v2204
        %v2209 = vand.u32 2147483647, %v2199
        %vm2210 = vcmp.eq.f32.partialorder %v2209, 8.507059e+37
        %v2211 = vand.u32 %v2199, 2147483648
        %v2212 = vor.u32 1.1754944e-38, %v2211
        %v2213 = vsel %vm2210, %v2212, %v2208
        %v2214 = vmul.f32 %v2189, %v2213
        %v2215 = vmin.f32 %v2214, 1.0
        %v2216 = vmax.f32 %v2215, -1.0
        %v2217 = vadd.f32 %v2176, 1.0
        %v2218 = vadd.f32 %v2216, 1.0
        %v2219 = vmul.f32 %v2133, %v2217
        %v2220 = vmul.f32 %v2134, %v2218
        %v2221 = vmul.f32 %v2095, %v2219
        %v2222 = vmul.f32 %v2097, %v2220
        %v2223 = vpack.c.bf16 %v2222, %v2221
        %v2224 = vld [vmem:[%s824] sm:$0xf]
        %v2225 = vld [vmem:[%s824 + $0x4] sm:$0xf]
        %v2226 = vld [vmem:[%s824 + $0x8] sm:$0xf]
        %v2227 = vld [vmem:[%s824 + $0xc] sm:$0xf]
        %v2228 = vld [vmem:[%s824 + $0x10] sm:$0xf]
        %v2229 = vld [vmem:[%s824 + $0x14] sm:$0xf]
        %v2230 = vld [vmem:[%s824 + $0x18] sm:$0xf]
        %v2231 = vld [vmem:[%s824 + $0x1c] sm:$0xf]
        %v2232 = vld [vmem:[%s824 + $0x20] sm:$0xf]
        %v2233 = vld [vmem:[%s824 + $0x24] sm:$0xf]
        %v2234 = vld [vmem:[%s824 + $0x28] sm:$0xf]
        %v2235 = vld [vmem:[%s824 + $0x2c] sm:$0xf]
        %v2236 = vld [vmem:[%s824 + $0x30] sm:$0xf]
        %v2237 = vld [vmem:[%s824 + $0x34] sm:$0xf]
        %v2238 = vld [vmem:[%s824 + $0x38] sm:$0xf]
        %v2239 = vld [vmem:[%s824 + $0x3c] sm:$0xf]
        %v2240 = vld [vmem:[%s827] sm:$0x1]
        %v2242 = vperm.slane %v2240, 0
        %v2260 = vunpack.c.l.b16 %v2224
        %v2261 = vunpack.c.l.b16 %v2225
        %v2262 = vunpack.c.l.b16 %v2226
        %v2263 = vunpack.c.l.b16 %v2227
        %v2264 = vunpack.c.l.b16 %v2228
        %v2265 = vunpack.c.l.b16 %v2229
        %v2266 = vunpack.c.l.b16 %v2230
        %v2267 = vunpack.c.l.b16 %v2231
        %v2268 = vunpack.c.l.b16 %v2232
        %v2269 = vunpack.c.l.b16 %v2233
        %v2270 = vunpack.c.l.b16 %v2234
        %v2271 = vunpack.c.l.b16 %v2235
        %v2272 = vunpack.c.l.b16 %v2236
        %v2273 = vunpack.c.l.b16 %v2237
        %v2274 = vunpack.c.l.b16 %v2238
        %v2275 = vunpack.c.l.b16 %v2239
        %v2276 = vpack.c.b16 %v2261, %v2260
        %v2277 = vpack.c.b16 %v2263, %v2262
        %v2278 = vpack.c.b16 %v2265, %v2264
        %v2279 = vpack.c.b16 %v2267, %v2266
        %v2280 = vpack.c.b16 %v2269, %v2268
        %v2281 = vpack.c.b16 %v2271, %v2270
        %v2282 = vpack.c.b16 %v2273, %v2272
        %v2283 = vpack.c.b16 %v2275, %v2274
        %2292 = vmatpush.bf16.msra.mxu0 %v2283
        %2293 = vmatpush.bf16.msra.mxu0 %v2282
        %2294 = vmatpush.bf16.msra.mxu0 %v2281
        %2295 = vmatpush.bf16.msra.mxu0 %v2280
        %2296 = vmatpush.bf16.msra.mxu0 %v2279
        %2297 = vmatpush.bf16.msra.mxu0 %v2278
        %2298 = vmatpush.bf16.msra.mxu0 %v2277
        %2299 = vmatpush.bf16.msra.mxu0 %v2276
        %2300 = vmatmul.bf16.gmra.mxu0 %v2223
        %v2301 = vpop.f32.mrf.mxu0
        %v2302 = vadd.f32 %v2242, %v2301
        %v2303 = vpop.f32.mrf.mxu0
        %v2304 = vadd.f32 %v2242, %v2303
        %2305 = vdwg.mxu0
        %v2306 = vadd.f32 %v2302, %v2003
        %v2307 = vadd.f32 %v2304, %v2004
        %2308 = vst.msk [vmem:[%s781] sm:$0xff] %vm843, %v2306
        %2309 = vst.msk [vmem:[%s781 + $0x8] sm:$0xff] %vm843, %v2307
        %s2310 = sand.u32 %s448, 1
        %s2311 = scalar_lea.sflag [#allocation4], %s2310
        %s2312 = sand.u32 %s448, 1
        %s2313 = smul.addr %s2312, 16
        %s2314 = scalar_lea.vmem [#allocation10], %s2313
        // Predicated region
        $region101: #{tpu_custom_call.1} parent=79 // pred_check
          %p2315 = pneg %p458
        $region102: #{tpu_custom_call.1} parent=79 // pred_check_branch
          %2317 = sbr.rel (%p2315) target = $region104
        $region103: #{tpu_custom_call.1} parent=79 // pred_region
          %s2318 = smul.u32 2, %s42
          %2320 = vsyncadd %s2311, 0
          %s2321 = smul.addr %s2318, 8
          %s2322 = scalar_lea.hbm %s15, %s2321
          %s2323 = sshll.u32 %s2314, 4
          %s2324 = int_to_ptr.vmem [resolvable:$true] %s2323
          %s2325 = sshll.u32 %s2322, 4
          %s2326 = int_to_ptr.hbm [resolvable:$true] %s2325
          %2331 = dma.vmem_to_hbm [thread:$0]  %s2324, 256, %s2326, %s2311, 128, 128, 8
        $region104: #{tpu_custom_call.1} parent=79 // pred_fallthru
          _
      $region80: #{tpu_custom_call.1} parent=5 // pred_fallthru
        _
      %p2332 = scmp.le.s32.totalorder 2, %s33
      // Predicated region
      $region105: #{tpu_custom_call.1} parent=5 // pred_check
        %p2333 = pneg %p2332
      $region106: #{tpu_custom_call.1} parent=5 // pred_check_branch
        %2335 = sbr.rel (%p2333) target = $region108
      $region107: #{tpu_custom_call.1} parent=5 // pred_region
        %s2336 = ssub.s32 %s33, 2
        // Predicated region
        $region109: #{tpu_custom_call.1} parent=107 // pred_check
          %p2337 = pneg %p464
        $region110: #{tpu_custom_call.1} parent=107 // pred_check_branch
          %2339 = sbr.rel (%p2337) target = $region112
        $region111: #{tpu_custom_call.1} parent=107 // pred_region
          %s2340 = sand.u32 %s449, 1
          %s2341 = scalar_lea.sflag [#allocation4], %s2340
          %s2342 = sand.u32 %s449, 1
          %s2343 = smul.addr %s2342, 16
          %s2344 = scalar_lea.vmem [#allocation10], %s2343
          %2346 = dma.done %s2341, 256
        $region112: #{tpu_custom_call.1} parent=107 // pred_fallthru
          _
      $region108: #{tpu_custom_call.1} parent=5 // pred_fallthru
        _
    $region6: #{tpu_custom_call.1} parent=1 // loop_footer
      %s37 = sadd.s32 1, %s33
    $region7: #{tpu_custom_call.1} parent=1 // loop_footer_branch
      %32 = sbr.rel target = $region3
    $region8: #{tpu_custom_call.1} parent=1 // loop_exit
      _
    %2347 = vsyncpa [#allocation3], 1
    %s2348 = scalar_lea.sflag [#allocation3], 1
    %2349 = vsyncpa %s2348, 1
    %2350 = vsyncpa [#allocation6], 1
    %s2351 = scalar_lea.sflag [#allocation6], 1
    %2352 = vsyncpa %s2351, 1
    %2353 = vsyncpa [#allocation9], 1
    %s2354 = scalar_lea.sflag [#allocation9], 1
    %2355 = vsyncpa %s2354, 1
    %2356 = vsyncpa [#allocation4], 1
    %s2357 = scalar_lea.sflag [#allocation4], 1
    %2358 = vsyncpa %s2357, 1

</llo_original>
